<compile_context>
chip_gen: v5e
topology: v5e:2x2
jax: 0.10.0
libtpu: 0.0.40
codegen_flags: <defaults>
</compile_context>

<pallas_src>
import math

import jax
import jax.numpy as jnp
from jax import lax
from jax.experimental import pallas as pl
from jax.experimental.pallas import tpu as pltpu


# ----------------------------- Pallas kernel ---------------------------------
def bug_detector_kernel(x_ref, lens_ref, wih_ref, bih_ref,
                        whh_f_ref, whh_b_ref, bhn_f_ref, bhn_b_ref,
                        wout_ref, bout_ref, o_ref):
    H = whh_f_ref.shape[0]
    B = lens_ref.shape[0]
    T = x_ref.shape[0] // B

    lens = lens_ref[...]  # (B, 1) int32

    # One big MXU-friendly input projection for every timestep and both directions.
    # Columns: [fwd r | fwd z | fwd n | bwd r | bwd z | bwd n], each H wide.
    # b_ih (all gates) and b_hh (r, z gates) are pre-folded into bih_ref.
    gates_in = (jnp.dot(x_ref[...], wih_ref[...],
                        preferred_element_type=jnp.float32)
                + bih_ref[...])                                   # (T*B, 6H)

    whh_f = whh_f_ref[...]                                        # (H, 3H)
    whh_b = whh_b_ref[...]                                        # (H, 3H)
    # Hoist the remaining (n-gate) recurrent bias broadcasts out of the loop.
    bhn_f = jnp.broadcast_to(bhn_f_ref[...], (B, H))
    bhn_b = jnp.broadcast_to(bhn_b_ref[...], (B, H))

    def gru_step(g, h, whh, bhn):
        # g: (B, 3H) precomputed input-side gates (r, z, n); h: (B, H)
        hh = jnp.dot(h, whh, preferred_element_type=jnp.float32)  # single fused recurrent dot
        rz = jax.nn.sigmoid(g[:, :2 * H] + hh[:, :2 * H])
        r = rz[:, :H]
        z = rz[:, H:]
        n = jnp.tanh(g[:, 2 * H:] + r * (hh[:, 2 * H:] + bhn))
        return (1.0 - z) * n + z * h

    h_f = jnp.zeros((B, H), jnp.float32)
    h_b = jnp.zeros((B, H), jnp.float32)

    # Fully unrolled; forward step t and backward step T-1-t share one iteration so the two
    # independent recurrences interleave on the MXU.
    for i in range(T):
        t_f = i
        t_b = T - 1 - i
        g_f = gates_in[t_f * B:(t_f + 1) * B, :3 * H]
        g_b = gates_in[t_b * B:(t_b + 1) * B, 3 * H:]
        h_f_new = gru_step(g_f, h_f, whh_f, bhn_f)
        h_b_new = gru_step(g_b, h_b, whh_b, bhn_b)
        # packed-sequence masking: only update while t < seq_len (single vselect each)
        h_f = jnp.where(t_f < lens, h_f_new, h_f)
        h_b = jnp.where(t_b < lens, h_b_new, h_b)

    # encoder_hidden = hidden[fwd] + hidden[bwd]  -> classifier Linear -> log_softmax
    h = h_f + h_b                                                 # (B, H)
    logits = (jnp.dot(h, wout_ref[...], preferred_element_type=jnp.float32)
              + bout_ref[...])                                    # (B, Cp) lane-dense (Cp=512)
    m = jnp.max(logits, axis=1, keepdims=True)
    lse = m + jnp.log(jnp.sum(jnp.exp(logits - m), axis=1, keepdims=True))
    o_ref[...] = logits - lse


# ------------------------------- Wrapper --------------------------------------
def bug_detector_forward(seqs, seqs_lens, params):
    """seqs: (T, B) int32 tokens (0 = pad); seqs_lens: (B,) int32 (sorted desc)."""
    T, B = seqs.shape
    emb = params["embedding"]                    # (V, H), row 0 = padding_idx
    H = emb.shape[1]
    C = params["w_out"].shape[0]
    Cp = ((C + 127) // 128) * 128                # lane-dense classifier width (500 -> 512)

    # Embedding lookup (plain JAX glue); flattened time-major so rows t*B..t*B+B-1 = timestep t.
    x2d = emb[seqs.reshape(-1)]                  # (T*B, H) f32
    lens2d = seqs_lens.astype(jnp.int32).reshape(B, 1)

    def fuse_dir(w_ih, w_hh, b_ih, b_hh):
        # Pre-transpose weights to (in, out); fold b_ih (all gates) + b_hh (r, z) into one bias.
        wih_t = w_ih.T                                            # (H, 3H), gate order r,z,n
        bih = jnp.concatenate([b_ih[:H] + b_hh[:H],
                               b_ih[H:2 * H] + b_hh[H:2 * H],
                               b_ih[2 * H:]], axis=0)             # (3H,)
        bhn = b_hh[2 * H:].reshape(1, H)                          # n-gate recurrent bias
        return wih_t, bih, w_hh.T, bhn

    wih_f, bih_f, whh_f, bhn_f = fuse_dir(params["w_ih_f"], params["w_hh_f"],
                                          params["b_ih_f"], params["b_hh_f"])
    wih_b, bih_b, whh_b, bhn_b = fuse_dir(params["w_ih_b"], params["w_hh_b"],
                                          params["b_ih_b"], params["b_hh_b"])
    wih_all = jnp.concatenate([wih_f, wih_b], axis=1)             # (H, 6H)
    bih_all = jnp.concatenate([bih_f, bih_b], axis=0).reshape(1, 6 * H)

    # Pad classifier to a lane-dense width; padded bias columns get -1e30 so they never affect
    # the log_softmax max / normalizer.
    w_out_k = jnp.zeros((H, Cp), jnp.float32).at[:, :C].set(params["w_out"].T)
    b_out_k = jnp.full((1, Cp), -1e30, jnp.float32).at[0, :C].set(params["b_out"])

    vmem = pl.BlockSpec(memory_space=pltpu.MemorySpace.VMEM)
    out = pl.pallas_call(
        bug_detector_kernel,
        out_shape=jax.ShapeDtypeStruct((B, Cp), jnp.float32),
        in_specs=[vmem] * 10,
        out_specs=vmem,
    )(x2d, lens2d, wih_all, bih_all, whh_f, whh_b, bhn_f, bhn_b, w_out_k, b_out_k)
    return out[:, :C]


# ------------------------ Pure-JAX reference (checking) -----------------------
def reference_forward(seqs, seqs_lens, params):
    emb = params["embedding"]
    x = emb[seqs]                                # (T, B, H)
    T, B, H = x.shape
    lens = seqs_lens.astype(jnp.int32).reshape(B, 1)

    def cell(x_t, h, w_ih, w_hh, b_ih, b_hh):
        gi = x_t @ w_ih.T + b_ih
        gh = h @ w_hh.T + b_hh
        r = jax.nn.sigmoid(gi[:, :H] + gh[:, :H])
        z = jax.nn.sigmoid(gi[:, H:2 * H] + gh[:, H:2 * H])
        n = jnp.tanh(gi[:, 2 * H:] + r * gh[:, 2 * H:])
        return (1.0 - z) * n + z * h

    h = jnp.zeros((B, H), jnp.float32)
    for t in range(T):
        hn = cell(x[t], h, params["w_ih_f"], params["w_hh_f"],
                  params["b_ih_f"], params["b_hh_f"])
        h = jnp.where(t < lens, hn, h)
    h_f = h

    h = jnp.zeros((B, H), jnp.float32)
    for t in range(T - 1, -1, -1):
        hn = cell(x[t], h, params["w_ih_b"], params["w_hh_b"],
                  params["b_ih_b"], params["b_hh_b"])
        h = jnp.where(t < lens, hn, h)
    h_b = h

    logits = (h_f + h_b) @ params["w_out"].T + params["b_out"]
    return jax.nn.log_softmax(logits, axis=1)


# ------------------------------ Param init -------------------------------------
def init_params(key, vocab_size, hidden_size, output_size):
    V, H, C = vocab_size, hidden_size, output_size
    ks = jax.random.split(key, 12)
    s = 1.0 / math.sqrt(H)

    def u(k, shape):
        return jax.random.uniform(k, shape, jnp.float32, -s, s)

    emb = 0.02 * jax.random.normal(ks[0], (V, H), jnp.float32)
    emb = emb.at[0].set(0.0)  # padding_idx=0

    # PyTorch layout: weight_ih/hh (3H, H), bias_ih/hh (3H,), gate order r, z, n.
    return {
        "embedding": emb,
        "w_ih_f": u(ks[1], (3 * H, H)), "w_hh_f": u(ks[2], (3 * H, H)),
        "b_ih_f": u(ks[3], (3 * H,)),   "b_hh_f": u(ks[4], (3 * H,)),
        "w_ih_b": u(ks[5], (3 * H, H)), "w_hh_b": u(ks[6], (3 * H, H)),
        "b_ih_b": u(ks[7], (3 * H,)),   "b_hh_b": u(ks[8], (3 * H,)),
        "w_out":  u(ks[9], (C, H)),     "b_out":  u(ks[10], (C,)),
    }


# --------------------------------- Main -----------------------------------------
if __name__ == "__main__":
    VOCAB = 100       # small synthetic vocab (module default is 20000)
    H = 32            # model_size=32 per BugDetector default
    T = 8             # max_seq_len
    B = 2             # batch
    C = 500           # AttnClassifier output_size

    key = jax.random.PRNGKey(0)
    kp, ks = jax.random.split(key)
    params = init_params(kp, VOCAB, H, C)

    seqs_lens = jnp.array([8, 5], dtype=jnp.int32)          # sorted descending, max == T
    seqs = jax.random.randint(ks, (T, B), 1, VOCAB).astype(jnp.int32)
    t_ids = jnp.arange(T)[:, None]
    seqs = jnp.where(t_ids < seqs_lens[None, :], seqs, 0)   # pad token id 0

    out = bug_detector_forward(seqs, seqs_lens, params)
    out = jax.block_until_ready(out)

    ref = reference_forward(seqs, seqs_lens, params)
    assert out.shape == (B, C)
    assert jnp.allclose(out, ref, rtol=1e-4, atol=1e-4), "mismatch vs JAX reference"

    print("KERNEL_OK")
</pallas_src>

<mosaic_0001>
module attributes {stable_mosaic.version = 11 : i64} {
  func.func @bug_detector_kernel(%arg0: memref<16x32xf32, #tpu.memory_space<vmem>>, %arg1: memref<2x1xi32, #tpu.memory_space<vmem>>, %arg2: memref<32x192xf32, #tpu.memory_space<vmem>>, %arg3: memref<1x192xf32, #tpu.memory_space<vmem>>, %arg4: memref<32x96xf32, #tpu.memory_space<vmem>>, %arg5: memref<32x96xf32, #tpu.memory_space<vmem>>, %arg6: memref<1x32xf32, #tpu.memory_space<vmem>>, %arg7: memref<1x32xf32, #tpu.memory_space<vmem>>, %arg8: memref<32x512xf32, #tpu.memory_space<vmem>>, %arg9: memref<1x512xf32, #tpu.memory_space<vmem>>, %arg10: memref<2x512xf32, #tpu.memory_space<vmem>>) attributes {dimension_semantics = [], scalar_prefetch = 0 : i64, scratch_operands = 0 : i64, tpu.core_type = #tpu.core_type<tc>} {
    %c0 = arith.constant 0 : index
    %c0_0 = arith.constant 0 : index
    %0 = vector.load %arg1[%c0, %c0_0] : memref<2x1xi32, #tpu.memory_space<vmem>>, vector<2x1xi32>
    %c0_1 = arith.constant 0 : index
    %c0_2 = arith.constant 0 : index
    %1 = vector.load %arg0[%c0_1, %c0_2] : memref<16x32xf32, #tpu.memory_space<vmem>>, vector<16x32xf32>
    %c0_3 = arith.constant 0 : index
    %c0_4 = arith.constant 0 : index
    %2 = vector.load %arg2[%c0_3, %c0_4] : memref<32x192xf32, #tpu.memory_space<vmem>>, vector<32x192xf32>
    %cst = arith.constant dense<0.000000e+00> : vector<16x192xf32>
    %3 = tpu.matmul %1, %2, %cst {dimension_numbers = #tpu.dot_dimension_numbers<[1], [0], [0], [1], [0, 0, 1, 1], [], []>} : vector<16x32xf32>, vector<32x192xf32>, vector<16x192xf32> -> vector<16x192xf32>
    %c0_5 = arith.constant 0 : index
    %c0_6 = arith.constant 0 : index
    %4 = vector.load %arg3[%c0_5, %c0_6] : memref<1x192xf32, #tpu.memory_space<vmem>>, vector<1x192xf32>
    %5 = vector.broadcast %4 : vector<1x192xf32> to vector<16x192xf32>
    %6 = arith.addf %3, %5 : vector<16x192xf32>
    %c0_7 = arith.constant 0 : index
    %c0_8 = arith.constant 0 : index
    %7 = vector.load %arg4[%c0_7, %c0_8] : memref<32x96xf32, #tpu.memory_space<vmem>>, vector<32x96xf32>
    %c0_9 = arith.constant 0 : index
    %c0_10 = arith.constant 0 : index
    %8 = vector.load %arg5[%c0_9, %c0_10] : memref<32x96xf32, #tpu.memory_space<vmem>>, vector<32x96xf32>
    %c0_11 = arith.constant 0 : index
    %c0_12 = arith.constant 0 : index
    %9 = vector.load %arg6[%c0_11, %c0_12] : memref<1x32xf32, #tpu.memory_space<vmem>>, vector<1x32xf32>
    %10 = vector.shape_cast %9 : vector<1x32xf32> to vector<1x32xf32>
    %11 = vector.broadcast %10 : vector<1x32xf32> to vector<2x32xf32>
    %c0_13 = arith.constant 0 : index
    %c0_14 = arith.constant 0 : index
    %12 = vector.load %arg7[%c0_13, %c0_14] : memref<1x32xf32, #tpu.memory_space<vmem>>, vector<1x32xf32>
    %13 = vector.shape_cast %12 : vector<1x32xf32> to vector<1x32xf32>
    %14 = vector.broadcast %13 : vector<1x32xf32> to vector<2x32xf32>
    %cst_15 = arith.constant 0.000000e+00 : f32
    %15 = vector.broadcast %cst_15 : f32 to vector<2x32xf32>
    %cst_16 = arith.constant 0.000000e+00 : f32
    %16 = vector.broadcast %cst_16 : f32 to vector<2x32xf32>
    %17 = vector.extract_strided_slice %6 {offsets = [0, 0], sizes = [2, 96], strides = [1, 1]} : vector<16x192xf32> to vector<2x96xf32>
    %18 = vector.extract_strided_slice %6 {offsets = [14, 96], sizes = [2, 96], strides = [1, 1]} : vector<16x192xf32> to vector<2x96xf32>
    %cst_17 = arith.constant dense<0.000000e+00> : vector<2x96xf32>
    %19 = tpu.matmul %15, %7, %cst_17 {dimension_numbers = #tpu.dot_dimension_numbers<[1], [0], [0], [1], [0, 0, 1, 1], [], []>} : vector<2x32xf32>, vector<32x96xf32>, vector<2x96xf32> -> vector<2x96xf32>
    %20 = vector.extract_strided_slice %17 {offsets = [0, 0], sizes = [2, 64], strides = [1, 1]} : vector<2x96xf32> to vector<2x64xf32>
    %21 = vector.extract_strided_slice %19 {offsets = [0, 0], sizes = [2, 64], strides = [1, 1]} : vector<2x96xf32> to vector<2x64xf32>
    %22 = arith.addf %20, %21 : vector<2x64xf32>
    %23 = arith.negf %22 : vector<2x64xf32>
    %24 = math.exp %23 : vector<2x64xf32>
    %cst_18 = arith.constant 1.000000e+00 : f32
    %25 = vector.broadcast %cst_18 : f32 to vector<2x64xf32>
    %26 = arith.addf %25, %24 : vector<2x64xf32>
    %27 = arith.divf %25, %26 : vector<2x64xf32>
    %28 = vector.extract_strided_slice %27 {offsets = [0, 0], sizes = [2, 32], strides = [1, 1]} : vector<2x64xf32> to vector<2x32xf32>
    %29 = vector.extract_strided_slice %27 {offsets = [0, 32], sizes = [2, 32], strides = [1, 1]} : vector<2x64xf32> to vector<2x32xf32>
    %30 = vector.extract_strided_slice %17 {offsets = [0, 64], sizes = [2, 32], strides = [1, 1]} : vector<2x96xf32> to vector<2x32xf32>
    %31 = vector.extract_strided_slice %19 {offsets = [0, 64], sizes = [2, 32], strides = [1, 1]} : vector<2x96xf32> to vector<2x32xf32>
    %32 = arith.addf %31, %11 : vector<2x32xf32>
    %33 = arith.mulf %28, %32 : vector<2x32xf32>
    %34 = arith.addf %30, %33 : vector<2x32xf32>
    %35 = math.tanh %34 : vector<2x32xf32>
    %cst_19 = arith.constant 1.000000e+00 : f32
    %36 = vector.broadcast %cst_19 : f32 to vector<2x32xf32>
    %37 = arith.subf %36, %29 : vector<2x32xf32>
    %38 = arith.mulf %37, %35 : vector<2x32xf32>
    %39 = arith.mulf %29, %15 : vector<2x32xf32>
    %40 = arith.addf %38, %39 : vector<2x32xf32>
    %cst_20 = arith.constant dense<0.000000e+00> : vector<2x96xf32>
    %41 = tpu.matmul %16, %8, %cst_20 {dimension_numbers = #tpu.dot_dimension_numbers<[1], [0], [0], [1], [0, 0, 1, 1], [], []>} : vector<2x32xf32>, vector<32x96xf32>, vector<2x96xf32> -> vector<2x96xf32>
    %42 = vector.extract_strided_slice %18 {offsets = [0, 0], sizes = [2, 64], strides = [1, 1]} : vector<2x96xf32> to vector<2x64xf32>
    %43 = vector.extract_strided_slice %41 {offsets = [0, 0], sizes = [2, 64], strides = [1, 1]} : vector<2x96xf32> to vector<2x64xf32>
    %44 = arith.addf %42, %43 : vector<2x64xf32>
    %45 = arith.negf %44 : vector<2x64xf32>
    %46 = math.exp %45 : vector<2x64xf32>
    %cst_21 = arith.constant 1.000000e+00 : f32
    %47 = vector.broadcast %cst_21 : f32 to vector<2x64xf32>
    %48 = arith.addf %47, %46 : vector<2x64xf32>
    %49 = arith.divf %47, %48 : vector<2x64xf32>
    %50 = vector.extract_strided_slice %49 {offsets = [0, 0], sizes = [2, 32], strides = [1, 1]} : vector<2x64xf32> to vector<2x32xf32>
    %51 = vector.extract_strided_slice %49 {offsets = [0, 32], sizes = [2, 32], strides = [1, 1]} : vector<2x64xf32> to vector<2x32xf32>
    %52 = vector.extract_strided_slice %18 {offsets = [0, 64], sizes = [2, 32], strides = [1, 1]} : vector<2x96xf32> to vector<2x32xf32>
    %53 = vector.extract_strided_slice %41 {offsets = [0, 64], sizes = [2, 32], strides = [1, 1]} : vector<2x96xf32> to vector<2x32xf32>
    %54 = arith.addf %53, %14 : vector<2x32xf32>
    %55 = arith.mulf %50, %54 : vector<2x32xf32>
    %56 = arith.addf %52, %55 : vector<2x32xf32>
    %57 = math.tanh %56 : vector<2x32xf32>
    %cst_22 = arith.constant 1.000000e+00 : f32
    %58 = vector.broadcast %cst_22 : f32 to vector<2x32xf32>
    %59 = arith.subf %58, %51 : vector<2x32xf32>
    %60 = arith.mulf %59, %57 : vector<2x32xf32>
    %61 = arith.mulf %51, %16 : vector<2x32xf32>
    %62 = arith.addf %60, %61 : vector<2x32xf32>
    %c0_i32 = arith.constant 0 : i32
    %63 = vector.broadcast %c0_i32 : i32 to vector<2x1xi32>
    %64 = arith.cmpi sgt, %0, %63 : vector<2x1xi32>
    %65 = vector.shape_cast %64 : vector<2x1xi1> to vector<2x1xi1>
    %66 = vector.broadcast %65 : vector<2x1xi1> to vector<2x32xi1>
    %67 = arith.select %66, %40, %15 : vector<2x32xi1>, vector<2x32xf32>
    %c7_i32 = arith.constant 7 : i32
    %68 = vector.broadcast %c7_i32 : i32 to vector<2x1xi32>
    %69 = arith.cmpi sgt, %0, %68 : vector<2x1xi32>
    %70 = vector.shape_cast %69 : vector<2x1xi1> to vector<2x1xi1>
    %71 = vector.broadcast %70 : vector<2x1xi1> to vector<2x32xi1>
    %72 = arith.select %71, %62, %16 : vector<2x32xi1>, vector<2x32xf32>
    %73 = vector.extract_strided_slice %6 {offsets = [2, 0], sizes = [2, 96], strides = [1, 1]} : vector<16x192xf32> to vector<2x96xf32>
    %74 = vector.extract_strided_slice %6 {offsets = [12, 96], sizes = [2, 96], strides = [1, 1]} : vector<16x192xf32> to vector<2x96xf32>
    %cst_23 = arith.constant dense<0.000000e+00> : vector<2x96xf32>
    %75 = tpu.matmul %67, %7, %cst_23 {dimension_numbers = #tpu.dot_dimension_numbers<[1], [0], [0], [1], [0, 0, 1, 1], [], []>} : vector<2x32xf32>, vector<32x96xf32>, vector<2x96xf32> -> vector<2x96xf32>
    %76 = vector.extract_strided_slice %73 {offsets = [0, 0], sizes = [2, 64], strides = [1, 1]} : vector<2x96xf32> to vector<2x64xf32>
    %77 = vector.extract_strided_slice %75 {offsets = [0, 0], sizes = [2, 64], strides = [1, 1]} : vector<2x96xf32> to vector<2x64xf32>
    %78 = arith.addf %76, %77 : vector<2x64xf32>
    %79 = arith.negf %78 : vector<2x64xf32>
    %80 = math.exp %79 : vector<2x64xf32>
    %cst_24 = arith.constant 1.000000e+00 : f32
    %81 = vector.broadcast %cst_24 : f32 to vector<2x64xf32>
    %82 = arith.addf %81, %80 : vector<2x64xf32>
    %83 = arith.divf %81, %82 : vector<2x64xf32>
    %84 = vector.extract_strided_slice %83 {offsets = [0, 0], sizes = [2, 32], strides = [1, 1]} : vector<2x64xf32> to vector<2x32xf32>
    %85 = vector.extract_strided_slice %83 {offsets = [0, 32], sizes = [2, 32], strides = [1, 1]} : vector<2x64xf32> to vector<2x32xf32>
    %86 = vector.extract_strided_slice %73 {offsets = [0, 64], sizes = [2, 32], strides = [1, 1]} : vector<2x96xf32> to vector<2x32xf32>
    %87 = vector.extract_strided_slice %75 {offsets = [0, 64], sizes = [2, 32], strides = [1, 1]} : vector<2x96xf32> to vector<2x32xf32>
    %88 = arith.addf %87, %11 : vector<2x32xf32>
    %89 = arith.mulf %84, %88 : vector<2x32xf32>
    %90 = arith.addf %86, %89 : vector<2x32xf32>
    %91 = math.tanh %90 : vector<2x32xf32>
    %cst_25 = arith.constant 1.000000e+00 : f32
    %92 = vector.broadcast %cst_25 : f32 to vector<2x32xf32>
    %93 = arith.subf %92, %85 : vector<2x32xf32>
    %94 = arith.mulf %93, %91 : vector<2x32xf32>
    %95 = arith.mulf %85, %67 : vector<2x32xf32>
    %96 = arith.addf %94, %95 : vector<2x32xf32>
    %cst_26 = arith.constant dense<0.000000e+00> : vector<2x96xf32>
    %97 = tpu.matmul %72, %8, %cst_26 {dimension_numbers = #tpu.dot_dimension_numbers<[1], [0], [0], [1], [0, 0, 1, 1], [], []>} : vector<2x32xf32>, vector<32x96xf32>, vector<2x96xf32> -> vector<2x96xf32>
    %98 = vector.extract_strided_slice %74 {offsets = [0, 0], sizes = [2, 64], strides = [1, 1]} : vector<2x96xf32> to vector<2x64xf32>
    %99 = vector.extract_strided_slice %97 {offsets = [0, 0], sizes = [2, 64], strides = [1, 1]} : vector<2x96xf32> to vector<2x64xf32>
    %100 = arith.addf %98, %99 : vector<2x64xf32>
    %101 = arith.negf %100 : vector<2x64xf32>
    %102 = math.exp %101 : vector<2x64xf32>
    %cst_27 = arith.constant 1.000000e+00 : f32
    %103 = vector.broadcast %cst_27 : f32 to vector<2x64xf32>
    %104 = arith.addf %103, %102 : vector<2x64xf32>
    %105 = arith.divf %103, %104 : vector<2x64xf32>
    %106 = vector.extract_strided_slice %105 {offsets = [0, 0], sizes = [2, 32], strides = [1, 1]} : vector<2x64xf32> to vector<2x32xf32>
    %107 = vector.extract_strided_slice %105 {offsets = [0, 32], sizes = [2, 32], strides = [1, 1]} : vector<2x64xf32> to vector<2x32xf32>
    %108 = vector.extract_strided_slice %74 {offsets = [0, 64], sizes = [2, 32], strides = [1, 1]} : vector<2x96xf32> to vector<2x32xf32>
    %109 = vector.extract_strided_slice %97 {offsets = [0, 64], sizes = [2, 32], strides = [1, 1]} : vector<2x96xf32> to vector<2x32xf32>
    %110 = arith.addf %109, %14 : vector<2x32xf32>
    %111 = arith.mulf %106, %110 : vector<2x32xf32>
    %112 = arith.addf %108, %111 : vector<2x32xf32>
    %113 = math.tanh %112 : vector<2x32xf32>
    %cst_28 = arith.constant 1.000000e+00 : f32
    %114 = vector.broadcast %cst_28 : f32 to vector<2x32xf32>
    %115 = arith.subf %114, %107 : vector<2x32xf32>
    %116 = arith.mulf %115, %113 : vector<2x32xf32>
    %117 = arith.mulf %107, %72 : vector<2x32xf32>
    %118 = arith.addf %116, %117 : vector<2x32xf32>
    %c1_i32 = arith.constant 1 : i32
    %119 = vector.broadcast %c1_i32 : i32 to vector<2x1xi32>
    %120 = arith.cmpi sgt, %0, %119 : vector<2x1xi32>
    %121 = vector.shape_cast %120 : vector<2x1xi1> to vector<2x1xi1>
    %122 = vector.broadcast %121 : vector<2x1xi1> to vector<2x32xi1>
    %123 = arith.select %122, %96, %67 : vector<2x32xi1>, vector<2x32xf32>
    %c6_i32 = arith.constant 6 : i32
    %124 = vector.broadcast %c6_i32 : i32 to vector<2x1xi32>
    %125 = arith.cmpi sgt, %0, %124 : vector<2x1xi32>
    %126 = vector.shape_cast %125 : vector<2x1xi1> to vector<2x1xi1>
    %127 = vector.broadcast %126 : vector<2x1xi1> to vector<2x32xi1>
    %128 = arith.select %127, %118, %72 : vector<2x32xi1>, vector<2x32xf32>
    %129 = vector.extract_strided_slice %6 {offsets = [4, 0], sizes = [2, 96], strides = [1, 1]} : vector<16x192xf32> to vector<2x96xf32>
    %130 = vector.extract_strided_slice %6 {offsets = [10, 96], sizes = [2, 96], strides = [1, 1]} : vector<16x192xf32> to vector<2x96xf32>
    %cst_29 = arith.constant dense<0.000000e+00> : vector<2x96xf32>
    %131 = tpu.matmul %123, %7, %cst_29 {dimension_numbers = #tpu.dot_dimension_numbers<[1], [0], [0], [1], [0, 0, 1, 1], [], []>} : vector<2x32xf32>, vector<32x96xf32>, vector<2x96xf32> -> vector<2x96xf32>
    %132 = vector.extract_strided_slice %129 {offsets = [0, 0], sizes = [2, 64], strides = [1, 1]} : vector<2x96xf32> to vector<2x64xf32>
    %133 = vector.extract_strided_slice %131 {offsets = [0, 0], sizes = [2, 64], strides = [1, 1]} : vector<2x96xf32> to vector<2x64xf32>
    %134 = arith.addf %132, %133 : vector<2x64xf32>
    %135 = arith.negf %134 : vector<2x64xf32>
    %136 = math.exp %135 : vector<2x64xf32>
    %cst_30 = arith.constant 1.000000e+00 : f32
    %137 = vector.broadcast %cst_30 : f32 to vector<2x64xf32>
    %138 = arith.addf %137, %136 : vector<2x64xf32>
    %139 = arith.divf %137, %138 : vector<2x64xf32>
    %140 = vector.extract_strided_slice %139 {offsets = [0, 0], sizes = [2, 32], strides = [1, 1]} : vector<2x64xf32> to vector<2x32xf32>
    %141 = vector.extract_strided_slice %139 {offsets = [0, 32], sizes = [2, 32], strides = [1, 1]} : vector<2x64xf32> to vector<2x32xf32>
    %142 = vector.extract_strided_slice %129 {offsets = [0, 64], sizes = [2, 32], strides = [1, 1]} : vector<2x96xf32> to vector<2x32xf32>
    %143 = vector.extract_strided_slice %131 {offsets = [0, 64], sizes = [2, 32], strides = [1, 1]} : vector<2x96xf32> to vector<2x32xf32>
    %144 = arith.addf %143, %11 : vector<2x32xf32>
    %145 = arith.mulf %140, %144 : vector<2x32xf32>
    %146 = arith.addf %142, %145 : vector<2x32xf32>
    %147 = math.tanh %146 : vector<2x32xf32>
    %cst_31 = arith.constant 1.000000e+00 : f32
    %148 = vector.broadcast %cst_31 : f32 to vector<2x32xf32>
    %149 = arith.subf %148, %141 : vector<2x32xf32>
    %150 = arith.mulf %149, %147 : vector<2x32xf32>
    %151 = arith.mulf %141, %123 : vector<2x32xf32>
    %152 = arith.addf %150, %151 : vector<2x32xf32>
    %cst_32 = arith.constant dense<0.000000e+00> : vector<2x96xf32>
    %153 = tpu.matmul %128, %8, %cst_32 {dimension_numbers = #tpu.dot_dimension_numbers<[1], [0], [0], [1], [0, 0, 1, 1], [], []>} : vector<2x32xf32>, vector<32x96xf32>, vector<2x96xf32> -> vector<2x96xf32>
    %154 = vector.extract_strided_slice %130 {offsets = [0, 0], sizes = [2, 64], strides = [1, 1]} : vector<2x96xf32> to vector<2x64xf32>
    %155 = vector.extract_strided_slice %153 {offsets = [0, 0], sizes = [2, 64], strides = [1, 1]} : vector<2x96xf32> to vector<2x64xf32>
    %156 = arith.addf %154, %155 : vector<2x64xf32>
    %157 = arith.negf %156 : vector<2x64xf32>
    %158 = math.exp %157 : vector<2x64xf32>
    %cst_33 = arith.constant 1.000000e+00 : f32
    %159 = vector.broadcast %cst_33 : f32 to vector<2x64xf32>
    %160 = arith.addf %159, %158 : vector<2x64xf32>
    %161 = arith.divf %159, %160 : vector<2x64xf32>
    %162 = vector.extract_strided_slice %161 {offsets = [0, 0], sizes = [2, 32], strides = [1, 1]} : vector<2x64xf32> to vector<2x32xf32>
    %163 = vector.extract_strided_slice %161 {offsets = [0, 32], sizes = [2, 32], strides = [1, 1]} : vector<2x64xf32> to vector<2x32xf32>
    %164 = vector.extract_strided_slice %130 {offsets = [0, 64], sizes = [2, 32], strides = [1, 1]} : vector<2x96xf32> to vector<2x32xf32>
    %165 = vector.extract_strided_slice %153 {offsets = [0, 64], sizes = [2, 32], strides = [1, 1]} : vector<2x96xf32> to vector<2x32xf32>
    %166 = arith.addf %165, %14 : vector<2x32xf32>
    %167 = arith.mulf %162, %166 : vector<2x32xf32>
    %168 = arith.addf %164, %167 : vector<2x32xf32>
    %169 = math.tanh %168 : vector<2x32xf32>
    %cst_34 = arith.constant 1.000000e+00 : f32
    %170 = vector.broadcast %cst_34 : f32 to vector<2x32xf32>
    %171 = arith.subf %170, %163 : vector<2x32xf32>
    %172 = arith.mulf %171, %169 : vector<2x32xf32>
    %173 = arith.mulf %163, %128 : vector<2x32xf32>
    %174 = arith.addf %172, %173 : vector<2x32xf32>
    %c2_i32 = arith.constant 2 : i32
    %175 = vector.broadcast %c2_i32 : i32 to vector<2x1xi32>
    %176 = arith.cmpi sgt, %0, %175 : vector<2x1xi32>
    %177 = vector.shape_cast %176 : vector<2x1xi1> to vector<2x1xi1>
    %178 = vector.broadcast %177 : vector<2x1xi1> to vector<2x32xi1>
    %179 = arith.select %178, %152, %123 : vector<2x32xi1>, vector<2x32xf32>
    %c5_i32 = arith.constant 5 : i32
    %180 = vector.broadcast %c5_i32 : i32 to vector<2x1xi32>
    %181 = arith.cmpi sgt, %0, %180 : vector<2x1xi32>
    %182 = vector.shape_cast %181 : vector<2x1xi1> to vector<2x1xi1>
    %183 = vector.broadcast %182 : vector<2x1xi1> to vector<2x32xi1>
    %184 = arith.select %183, %174, %128 : vector<2x32xi1>, vector<2x32xf32>
    %185 = vector.extract_strided_slice %6 {offsets = [6, 0], sizes = [2, 96], strides = [1, 1]} : vector<16x192xf32> to vector<2x96xf32>
    %186 = vector.extract_strided_slice %6 {offsets = [8, 96], sizes = [2, 96], strides = [1, 1]} : vector<16x192xf32> to vector<2x96xf32>
    %cst_35 = arith.constant dense<0.000000e+00> : vector<2x96xf32>
    %187 = tpu.matmul %179, %7, %cst_35 {dimension_numbers = #tpu.dot_dimension_numbers<[1], [0], [0], [1], [0, 0, 1, 1], [], []>} : vector<2x32xf32>, vector<32x96xf32>, vector<2x96xf32> -> vector<2x96xf32>
    %188 = vector.extract_strided_slice %185 {offsets = [0, 0], sizes = [2, 64], strides = [1, 1]} : vector<2x96xf32> to vector<2x64xf32>
    %189 = vector.extract_strided_slice %187 {offsets = [0, 0], sizes = [2, 64], strides = [1, 1]} : vector<2x96xf32> to vector<2x64xf32>
    %190 = arith.addf %188, %189 : vector<2x64xf32>
    %191 = arith.negf %190 : vector<2x64xf32>
    %192 = math.exp %191 : vector<2x64xf32>
    %cst_36 = arith.constant 1.000000e+00 : f32
    %193 = vector.broadcast %cst_36 : f32 to vector<2x64xf32>
    %194 = arith.addf %193, %192 : vector<2x64xf32>
    %195 = arith.divf %193, %194 : vector<2x64xf32>
    %196 = vector.extract_strided_slice %195 {offsets = [0, 0], sizes = [2, 32], strides = [1, 1]} : vector<2x64xf32> to vector<2x32xf32>
    %197 = vector.extract_strided_slice %195 {offsets = [0, 32], sizes = [2, 32], strides = [1, 1]} : vector<2x64xf32> to vector<2x32xf32>
    %198 = vector.extract_strided_slice %185 {offsets = [0, 64], sizes = [2, 32], strides = [1, 1]} : vector<2x96xf32> to vector<2x32xf32>
    %199 = vector.extract_strided_slice %187 {offsets = [0, 64], sizes = [2, 32], strides = [1, 1]} : vector<2x96xf32> to vector<2x32xf32>
    %200 = arith.addf %199, %11 : vector<2x32xf32>
    %201 = arith.mulf %196, %200 : vector<2x32xf32>
    %202 = arith.addf %198, %201 : vector<2x32xf32>
    %203 = math.tanh %202 : vector<2x32xf32>
    %cst_37 = arith.constant 1.000000e+00 : f32
    %204 = vector.broadcast %cst_37 : f32 to vector<2x32xf32>
    %205 = arith.subf %204, %197 : vector<2x32xf32>
    %206 = arith.mulf %205, %203 : vector<2x32xf32>
    %207 = arith.mulf %197, %179 : vector<2x32xf32>
    %208 = arith.addf %206, %207 : vector<2x32xf32>
    %cst_38 = arith.constant dense<0.000000e+00> : vector<2x96xf32>
    %209 = tpu.matmul %184, %8, %cst_38 {dimension_numbers = #tpu.dot_dimension_numbers<[1], [0], [0], [1], [0, 0, 1, 1], [], []>} : vector<2x32xf32>, vector<32x96xf32>, vector<2x96xf32> -> vector<2x96xf32>
    %210 = vector.extract_strided_slice %186 {offsets = [0, 0], sizes = [2, 64], strides = [1, 1]} : vector<2x96xf32> to vector<2x64xf32>
    %211 = vector.extract_strided_slice %209 {offsets = [0, 0], sizes = [2, 64], strides = [1, 1]} : vector<2x96xf32> to vector<2x64xf32>
    %212 = arith.addf %210, %211 : vector<2x64xf32>
    %213 = arith.negf %212 : vector<2x64xf32>
    %214 = math.exp %213 : vector<2x64xf32>
    %cst_39 = arith.constant 1.000000e+00 : f32
    %215 = vector.broadcast %cst_39 : f32 to vector<2x64xf32>
    %216 = arith.addf %215, %214 : vector<2x64xf32>
    %217 = arith.divf %215, %216 : vector<2x64xf32>
    %218 = vector.extract_strided_slice %217 {offsets = [0, 0], sizes = [2, 32], strides = [1, 1]} : vector<2x64xf32> to vector<2x32xf32>
    %219 = vector.extract_strided_slice %217 {offsets = [0, 32], sizes = [2, 32], strides = [1, 1]} : vector<2x64xf32> to vector<2x32xf32>
    %220 = vector.extract_strided_slice %186 {offsets = [0, 64], sizes = [2, 32], strides = [1, 1]} : vector<2x96xf32> to vector<2x32xf32>
    %221 = vector.extract_strided_slice %209 {offsets = [0, 64], sizes = [2, 32], strides = [1, 1]} : vector<2x96xf32> to vector<2x32xf32>
    %222 = arith.addf %221, %14 : vector<2x32xf32>
    %223 = arith.mulf %218, %222 : vector<2x32xf32>
    %224 = arith.addf %220, %223 : vector<2x32xf32>
    %225 = math.tanh %224 : vector<2x32xf32>
    %cst_40 = arith.constant 1.000000e+00 : f32
    %226 = vector.broadcast %cst_40 : f32 to vector<2x32xf32>
    %227 = arith.subf %226, %219 : vector<2x32xf32>
    %228 = arith.mulf %227, %225 : vector<2x32xf32>
    %229 = arith.mulf %219, %184 : vector<2x32xf32>
    %230 = arith.addf %228, %229 : vector<2x32xf32>
    %c3_i32 = arith.constant 3 : i32
    %231 = vector.broadcast %c3_i32 : i32 to vector<2x1xi32>
    %232 = arith.cmpi sgt, %0, %231 : vector<2x1xi32>
    %233 = vector.shape_cast %232 : vector<2x1xi1> to vector<2x1xi1>
    %234 = vector.broadcast %233 : vector<2x1xi1> to vector<2x32xi1>
    %235 = arith.select %234, %208, %179 : vector<2x32xi1>, vector<2x32xf32>
    %c4_i32 = arith.constant 4 : i32
    %236 = vector.broadcast %c4_i32 : i32 to vector<2x1xi32>
    %237 = arith.cmpi sgt, %0, %236 : vector<2x1xi32>
    %238 = vector.shape_cast %237 : vector<2x1xi1> to vector<2x1xi1>
    %239 = vector.broadcast %238 : vector<2x1xi1> to vector<2x32xi1>
    %240 = arith.select %239, %230, %184 : vector<2x32xi1>, vector<2x32xf32>
    %241 = vector.extract_strided_slice %6 {offsets = [8, 0], sizes = [2, 96], strides = [1, 1]} : vector<16x192xf32> to vector<2x96xf32>
    %242 = vector.extract_strided_slice %6 {offsets = [6, 96], sizes = [2, 96], strides = [1, 1]} : vector<16x192xf32> to vector<2x96xf32>
    %cst_41 = arith.constant dense<0.000000e+00> : vector<2x96xf32>
    %243 = tpu.matmul %235, %7, %cst_41 {dimension_numbers = #tpu.dot_dimension_numbers<[1], [0], [0], [1], [0, 0, 1, 1], [], []>} : vector<2x32xf32>, vector<32x96xf32>, vector<2x96xf32> -> vector<2x96xf32>
    %244 = vector.extract_strided_slice %241 {offsets = [0, 0], sizes = [2, 64], strides = [1, 1]} : vector<2x96xf32> to vector<2x64xf32>
    %245 = vector.extract_strided_slice %243 {offsets = [0, 0], sizes = [2, 64], strides = [1, 1]} : vector<2x96xf32> to vector<2x64xf32>
    %246 = arith.addf %244, %245 : vector<2x64xf32>
    %247 = arith.negf %246 : vector<2x64xf32>
    %248 = math.exp %247 : vector<2x64xf32>
    %cst_42 = arith.constant 1.000000e+00 : f32
    %249 = vector.broadcast %cst_42 : f32 to vector<2x64xf32>
    %250 = arith.addf %249, %248 : vector<2x64xf32>
    %251 = arith.divf %249, %250 : vector<2x64xf32>
    %252 = vector.extract_strided_slice %251 {offsets = [0, 0], sizes = [2, 32], strides = [1, 1]} : vector<2x64xf32> to vector<2x32xf32>
    %253 = vector.extract_strided_slice %251 {offsets = [0, 32], sizes = [2, 32], strides = [1, 1]} : vector<2x64xf32> to vector<2x32xf32>
    %254 = vector.extract_strided_slice %241 {offsets = [0, 64], sizes = [2, 32], strides = [1, 1]} : vector<2x96xf32> to vector<2x32xf32>
    %255 = vector.extract_strided_slice %243 {offsets = [0, 64], sizes = [2, 32], strides = [1, 1]} : vector<2x96xf32> to vector<2x32xf32>
    %256 = arith.addf %255, %11 : vector<2x32xf32>
    %257 = arith.mulf %252, %256 : vector<2x32xf32>
    %258 = arith.addf %254, %257 : vector<2x32xf32>
    %259 = math.tanh %258 : vector<2x32xf32>
    %cst_43 = arith.constant 1.000000e+00 : f32
    %260 = vector.broadcast %cst_43 : f32 to vector<2x32xf32>
    %261 = arith.subf %260, %253 : vector<2x32xf32>
    %262 = arith.mulf %261, %259 : vector<2x32xf32>
    %263 = arith.mulf %253, %235 : vector<2x32xf32>
    %264 = arith.addf %262, %263 : vector<2x32xf32>
    %cst_44 = arith.constant dense<0.000000e+00> : vector<2x96xf32>
    %265 = tpu.matmul %240, %8, %cst_44 {dimension_numbers = #tpu.dot_dimension_numbers<[1], [0], [0], [1], [0, 0, 1, 1], [], []>} : vector<2x32xf32>, vector<32x96xf32>, vector<2x96xf32> -> vector<2x96xf32>
    %266 = vector.extract_strided_slice %242 {offsets = [0, 0], sizes = [2, 64], strides = [1, 1]} : vector<2x96xf32> to vector<2x64xf32>
    %267 = vector.extract_strided_slice %265 {offsets = [0, 0], sizes = [2, 64], strides = [1, 1]} : vector<2x96xf32> to vector<2x64xf32>
    %268 = arith.addf %266, %267 : vector<2x64xf32>
    %269 = arith.negf %268 : vector<2x64xf32>
    %270 = math.exp %269 : vector<2x64xf32>
    %cst_45 = arith.constant 1.000000e+00 : f32
    %271 = vector.broadcast %cst_45 : f32 to vector<2x64xf32>
    %272 = arith.addf %271, %270 : vector<2x64xf32>
    %273 = arith.divf %271, %272 : vector<2x64xf32>
    %274 = vector.extract_strided_slice %273 {offsets = [0, 0], sizes = [2, 32], strides = [1, 1]} : vector<2x64xf32> to vector<2x32xf32>
    %275 = vector.extract_strided_slice %273 {offsets = [0, 32], sizes = [2, 32], strides = [1, 1]} : vector<2x64xf32> to vector<2x32xf32>
    %276 = vector.extract_strided_slice %242 {offsets = [0, 64], sizes = [2, 32], strides = [1, 1]} : vector<2x96xf32> to vector<2x32xf32>
    %277 = vector.extract_strided_slice %265 {offsets = [0, 64], sizes = [2, 32], strides = [1, 1]} : vector<2x96xf32> to vector<2x32xf32>
    %278 = arith.addf %277, %14 : vector<2x32xf32>
    %279 = arith.mulf %274, %278 : vector<2x32xf32>
    %280 = arith.addf %276, %279 : vector<2x32xf32>
    %281 = math.tanh %280 : vector<2x32xf32>
    %cst_46 = arith.constant 1.000000e+00 : f32
    %282 = vector.broadcast %cst_46 : f32 to vector<2x32xf32>
    %283 = arith.subf %282, %275 : vector<2x32xf32>
    %284 = arith.mulf %283, %281 : vector<2x32xf32>
    %285 = arith.mulf %275, %240 : vector<2x32xf32>
    %286 = arith.addf %284, %285 : vector<2x32xf32>
    %c4_i32_47 = arith.constant 4 : i32
    %287 = vector.broadcast %c4_i32_47 : i32 to vector<2x1xi32>
    %288 = arith.cmpi sgt, %0, %287 : vector<2x1xi32>
    %289 = vector.shape_cast %288 : vector<2x1xi1> to vector<2x1xi1>
    %290 = vector.broadcast %289 : vector<2x1xi1> to vector<2x32xi1>
    %291 = arith.select %290, %264, %235 : vector<2x32xi1>, vector<2x32xf32>
    %c3_i32_48 = arith.constant 3 : i32
    %292 = vector.broadcast %c3_i32_48 : i32 to vector<2x1xi32>
    %293 = arith.cmpi sgt, %0, %292 : vector<2x1xi32>
    %294 = vector.shape_cast %293 : vector<2x1xi1> to vector<2x1xi1>
    %295 = vector.broadcast %294 : vector<2x1xi1> to vector<2x32xi1>
    %296 = arith.select %295, %286, %240 : vector<2x32xi1>, vector<2x32xf32>
    %297 = vector.extract_strided_slice %6 {offsets = [10, 0], sizes = [2, 96], strides = [1, 1]} : vector<16x192xf32> to vector<2x96xf32>
    %298 = vector.extract_strided_slice %6 {offsets = [4, 96], sizes = [2, 96], strides = [1, 1]} : vector<16x192xf32> to vector<2x96xf32>
    %cst_49 = arith.constant dense<0.000000e+00> : vector<2x96xf32>
    %299 = tpu.matmul %291, %7, %cst_49 {dimension_numbers = #tpu.dot_dimension_numbers<[1], [0], [0], [1], [0, 0, 1, 1], [], []>} : vector<2x32xf32>, vector<32x96xf32>, vector<2x96xf32> -> vector<2x96xf32>
    %300 = vector.extract_strided_slice %297 {offsets = [0, 0], sizes = [2, 64], strides = [1, 1]} : vector<2x96xf32> to vector<2x64xf32>
    %301 = vector.extract_strided_slice %299 {offsets = [0, 0], sizes = [2, 64], strides = [1, 1]} : vector<2x96xf32> to vector<2x64xf32>
    %302 = arith.addf %300, %301 : vector<2x64xf32>
    %303 = arith.negf %302 : vector<2x64xf32>
    %304 = math.exp %303 : vector<2x64xf32>
    %cst_50 = arith.constant 1.000000e+00 : f32
    %305 = vector.broadcast %cst_50 : f32 to vector<2x64xf32>
    %306 = arith.addf %305, %304 : vector<2x64xf32>
    %307 = arith.divf %305, %306 : vector<2x64xf32>
    %308 = vector.extract_strided_slice %307 {offsets = [0, 0], sizes = [2, 32], strides = [1, 1]} : vector<2x64xf32> to vector<2x32xf32>
    %309 = vector.extract_strided_slice %307 {offsets = [0, 32], sizes = [2, 32], strides = [1, 1]} : vector<2x64xf32> to vector<2x32xf32>
    %310 = vector.extract_strided_slice %297 {offsets = [0, 64], sizes = [2, 32], strides = [1, 1]} : vector<2x96xf32> to vector<2x32xf32>
    %311 = vector.extract_strided_slice %299 {offsets = [0, 64], sizes = [2, 32], strides = [1, 1]} : vector<2x96xf32> to vector<2x32xf32>
    %312 = arith.addf %311, %11 : vector<2x32xf32>
    %313 = arith.mulf %308, %312 : vector<2x32xf32>
    %314 = arith.addf %310, %313 : vector<2x32xf32>
    %315 = math.tanh %314 : vector<2x32xf32>
    %cst_51 = arith.constant 1.000000e+00 : f32
    %316 = vector.broadcast %cst_51 : f32 to vector<2x32xf32>
    %317 = arith.subf %316, %309 : vector<2x32xf32>
    %318 = arith.mulf %317, %315 : vector<2x32xf32>
    %319 = arith.mulf %309, %291 : vector<2x32xf32>
    %320 = arith.addf %318, %319 : vector<2x32xf32>
    %cst_52 = arith.constant dense<0.000000e+00> : vector<2x96xf32>
    %321 = tpu.matmul %296, %8, %cst_52 {dimension_numbers = #tpu.dot_dimension_numbers<[1], [0], [0], [1], [0, 0, 1, 1], [], []>} : vector<2x32xf32>, vector<32x96xf32>, vector<2x96xf32> -> vector<2x96xf32>
    %322 = vector.extract_strided_slice %298 {offsets = [0, 0], sizes = [2, 64], strides = [1, 1]} : vector<2x96xf32> to vector<2x64xf32>
    %323 = vector.extract_strided_slice %321 {offsets = [0, 0], sizes = [2, 64], strides = [1, 1]} : vector<2x96xf32> to vector<2x64xf32>
    %324 = arith.addf %322, %323 : vector<2x64xf32>
    %325 = arith.negf %324 : vector<2x64xf32>
    %326 = math.exp %325 : vector<2x64xf32>
    %cst_53 = arith.constant 1.000000e+00 : f32
    %327 = vector.broadcast %cst_53 : f32 to vector<2x64xf32>
    %328 = arith.addf %327, %326 : vector<2x64xf32>
    %329 = arith.divf %327, %328 : vector<2x64xf32>
    %330 = vector.extract_strided_slice %329 {offsets = [0, 0], sizes = [2, 32], strides = [1, 1]} : vector<2x64xf32> to vector<2x32xf32>
    %331 = vector.extract_strided_slice %329 {offsets = [0, 32], sizes = [2, 32], strides = [1, 1]} : vector<2x64xf32> to vector<2x32xf32>
    %332 = vector.extract_strided_slice %298 {offsets = [0, 64], sizes = [2, 32], strides = [1, 1]} : vector<2x96xf32> to vector<2x32xf32>
    %333 = vector.extract_strided_slice %321 {offsets = [0, 64], sizes = [2, 32], strides = [1, 1]} : vector<2x96xf32> to vector<2x32xf32>
    %334 = arith.addf %333, %14 : vector<2x32xf32>
    %335 = arith.mulf %330, %334 : vector<2x32xf32>
    %336 = arith.addf %332, %335 : vector<2x32xf32>
    %337 = math.tanh %336 : vector<2x32xf32>
    %cst_54 = arith.constant 1.000000e+00 : f32
    %338 = vector.broadcast %cst_54 : f32 to vector<2x32xf32>
    %339 = arith.subf %338, %331 : vector<2x32xf32>
    %340 = arith.mulf %339, %337 : vector<2x32xf32>
    %341 = arith.mulf %331, %296 : vector<2x32xf32>
    %342 = arith.addf %340, %341 : vector<2x32xf32>
    %c5_i32_55 = arith.constant 5 : i32
    %343 = vector.broadcast %c5_i32_55 : i32 to vector<2x1xi32>
    %344 = arith.cmpi sgt, %0, %343 : vector<2x1xi32>
    %345 = vector.shape_cast %344 : vector<2x1xi1> to vector<2x1xi1>
    %346 = vector.broadcast %345 : vector<2x1xi1> to vector<2x32xi1>
    %347 = arith.select %346, %320, %291 : vector<2x32xi1>, vector<2x32xf32>
    %c2_i32_56 = arith.constant 2 : i32
    %348 = vector.broadcast %c2_i32_56 : i32 to vector<2x1xi32>
    %349 = arith.cmpi sgt, %0, %348 : vector<2x1xi32>
    %350 = vector.shape_cast %349 : vector<2x1xi1> to vector<2x1xi1>
    %351 = vector.broadcast %350 : vector<2x1xi1> to vector<2x32xi1>
    %352 = arith.select %351, %342, %296 : vector<2x32xi1>, vector<2x32xf32>
    %353 = vector.extract_strided_slice %6 {offsets = [12, 0], sizes = [2, 96], strides = [1, 1]} : vector<16x192xf32> to vector<2x96xf32>
    %354 = vector.extract_strided_slice %6 {offsets = [2, 96], sizes = [2, 96], strides = [1, 1]} : vector<16x192xf32> to vector<2x96xf32>
    %cst_57 = arith.constant dense<0.000000e+00> : vector<2x96xf32>
    %355 = tpu.matmul %347, %7, %cst_57 {dimension_numbers = #tpu.dot_dimension_numbers<[1], [0], [0], [1], [0, 0, 1, 1], [], []>} : vector<2x32xf32>, vector<32x96xf32>, vector<2x96xf32> -> vector<2x96xf32>
    %356 = vector.extract_strided_slice %353 {offsets = [0, 0], sizes = [2, 64], strides = [1, 1]} : vector<2x96xf32> to vector<2x64xf32>
    %357 = vector.extract_strided_slice %355 {offsets = [0, 0], sizes = [2, 64], strides = [1, 1]} : vector<2x96xf32> to vector<2x64xf32>
    %358 = arith.addf %356, %357 : vector<2x64xf32>
    %359 = arith.negf %358 : vector<2x64xf32>
    %360 = math.exp %359 : vector<2x64xf32>
    %cst_58 = arith.constant 1.000000e+00 : f32
    %361 = vector.broadcast %cst_58 : f32 to vector<2x64xf32>
    %362 = arith.addf %361, %360 : vector<2x64xf32>
    %363 = arith.divf %361, %362 : vector<2x64xf32>
    %364 = vector.extract_strided_slice %363 {offsets = [0, 0], sizes = [2, 32], strides = [1, 1]} : vector<2x64xf32> to vector<2x32xf32>
    %365 = vector.extract_strided_slice %363 {offsets = [0, 32], sizes = [2, 32], strides = [1, 1]} : vector<2x64xf32> to vector<2x32xf32>
    %366 = vector.extract_strided_slice %353 {offsets = [0, 64], sizes = [2, 32], strides = [1, 1]} : vector<2x96xf32> to vector<2x32xf32>
    %367 = vector.extract_strided_slice %355 {offsets = [0, 64], sizes = [2, 32], strides = [1, 1]} : vector<2x96xf32> to vector<2x32xf32>
    %368 = arith.addf %367, %11 : vector<2x32xf32>
    %369 = arith.mulf %364, %368 : vector<2x32xf32>
    %370 = arith.addf %366, %369 : vector<2x32xf32>
    %371 = math.tanh %370 : vector<2x32xf32>
    %cst_59 = arith.constant 1.000000e+00 : f32
    %372 = vector.broadcast %cst_59 : f32 to vector<2x32xf32>
    %373 = arith.subf %372, %365 : vector<2x32xf32>
    %374 = arith.mulf %373, %371 : vector<2x32xf32>
    %375 = arith.mulf %365, %347 : vector<2x32xf32>
    %376 = arith.addf %374, %375 : vector<2x32xf32>
    %cst_60 = arith.constant dense<0.000000e+00> : vector<2x96xf32>
    %377 = tpu.matmul %352, %8, %cst_60 {dimension_numbers = #tpu.dot_dimension_numbers<[1], [0], [0], [1], [0, 0, 1, 1], [], []>} : vector<2x32xf32>, vector<32x96xf32>, vector<2x96xf32> -> vector<2x96xf32>
    %378 = vector.extract_strided_slice %354 {offsets = [0, 0], sizes = [2, 64], strides = [1, 1]} : vector<2x96xf32> to vector<2x64xf32>
    %379 = vector.extract_strided_slice %377 {offsets = [0, 0], sizes = [2, 64], strides = [1, 1]} : vector<2x96xf32> to vector<2x64xf32>
    %380 = arith.addf %378, %379 : vector<2x64xf32>
    %381 = arith.negf %380 : vector<2x64xf32>
    %382 = math.exp %381 : vector<2x64xf32>
    %cst_61 = arith.constant 1.000000e+00 : f32
    %383 = vector.broadcast %cst_61 : f32 to vector<2x64xf32>
    %384 = arith.addf %383, %382 : vector<2x64xf32>
    %385 = arith.divf %383, %384 : vector<2x64xf32>
    %386 = vector.extract_strided_slice %385 {offsets = [0, 0], sizes = [2, 32], strides = [1, 1]} : vector<2x64xf32> to vector<2x32xf32>
    %387 = vector.extract_strided_slice %385 {offsets = [0, 32], sizes = [2, 32], strides = [1, 1]} : vector<2x64xf32> to vector<2x32xf32>
    %388 = vector.extract_strided_slice %354 {offsets = [0, 64], sizes = [2, 32], strides = [1, 1]} : vector<2x96xf32> to vector<2x32xf32>
    %389 = vector.extract_strided_slice %377 {offsets = [0, 64], sizes = [2, 32], strides = [1, 1]} : vector<2x96xf32> to vector<2x32xf32>
    %390 = arith.addf %389, %14 : vector<2x32xf32>
    %391 = arith.mulf %386, %390 : vector<2x32xf32>
    %392 = arith.addf %388, %391 : vector<2x32xf32>
    %393 = math.tanh %392 : vector<2x32xf32>
    %cst_62 = arith.constant 1.000000e+00 : f32
    %394 = vector.broadcast %cst_62 : f32 to vector<2x32xf32>
    %395 = arith.subf %394, %387 : vector<2x32xf32>
    %396 = arith.mulf %395, %393 : vector<2x32xf32>
    %397 = arith.mulf %387, %352 : vector<2x32xf32>
    %398 = arith.addf %396, %397 : vector<2x32xf32>
    %c6_i32_63 = arith.constant 6 : i32
    %399 = vector.broadcast %c6_i32_63 : i32 to vector<2x1xi32>
    %400 = arith.cmpi sgt, %0, %399 : vector<2x1xi32>
    %401 = vector.shape_cast %400 : vector<2x1xi1> to vector<2x1xi1>
    %402 = vector.broadcast %401 : vector<2x1xi1> to vector<2x32xi1>
    %403 = arith.select %402, %376, %347 : vector<2x32xi1>, vector<2x32xf32>
    %c1_i32_64 = arith.constant 1 : i32
    %404 = vector.broadcast %c1_i32_64 : i32 to vector<2x1xi32>
    %405 = arith.cmpi sgt, %0, %404 : vector<2x1xi32>
    %406 = vector.shape_cast %405 : vector<2x1xi1> to vector<2x1xi1>
    %407 = vector.broadcast %406 : vector<2x1xi1> to vector<2x32xi1>
    %408 = arith.select %407, %398, %352 : vector<2x32xi1>, vector<2x32xf32>
    %409 = vector.extract_strided_slice %6 {offsets = [14, 0], sizes = [2, 96], strides = [1, 1]} : vector<16x192xf32> to vector<2x96xf32>
    %410 = vector.extract_strided_slice %6 {offsets = [0, 96], sizes = [2, 96], strides = [1, 1]} : vector<16x192xf32> to vector<2x96xf32>
    %cst_65 = arith.constant dense<0.000000e+00> : vector<2x96xf32>
    %411 = tpu.matmul %403, %7, %cst_65 {dimension_numbers = #tpu.dot_dimension_numbers<[1], [0], [0], [1], [0, 0, 1, 1], [], []>} : vector<2x32xf32>, vector<32x96xf32>, vector<2x96xf32> -> vector<2x96xf32>
    %412 = vector.extract_strided_slice %409 {offsets = [0, 0], sizes = [2, 64], strides = [1, 1]} : vector<2x96xf32> to vector<2x64xf32>
    %413 = vector.extract_strided_slice %411 {offsets = [0, 0], sizes = [2, 64], strides = [1, 1]} : vector<2x96xf32> to vector<2x64xf32>
    %414 = arith.addf %412, %413 : vector<2x64xf32>
    %415 = arith.negf %414 : vector<2x64xf32>
    %416 = math.exp %415 : vector<2x64xf32>
    %cst_66 = arith.constant 1.000000e+00 : f32
    %417 = vector.broadcast %cst_66 : f32 to vector<2x64xf32>
    %418 = arith.addf %417, %416 : vector<2x64xf32>
    %419 = arith.divf %417, %418 : vector<2x64xf32>
    %420 = vector.extract_strided_slice %419 {offsets = [0, 0], sizes = [2, 32], strides = [1, 1]} : vector<2x64xf32> to vector<2x32xf32>
    %421 = vector.extract_strided_slice %419 {offsets = [0, 32], sizes = [2, 32], strides = [1, 1]} : vector<2x64xf32> to vector<2x32xf32>
    %422 = vector.extract_strided_slice %409 {offsets = [0, 64], sizes = [2, 32], strides = [1, 1]} : vector<2x96xf32> to vector<2x32xf32>
    %423 = vector.extract_strided_slice %411 {offsets = [0, 64], sizes = [2, 32], strides = [1, 1]} : vector<2x96xf32> to vector<2x32xf32>
    %424 = arith.addf %423, %11 : vector<2x32xf32>
    %425 = arith.mulf %420, %424 : vector<2x32xf32>
    %426 = arith.addf %422, %425 : vector<2x32xf32>
    %427 = math.tanh %426 : vector<2x32xf32>
    %cst_67 = arith.constant 1.000000e+00 : f32
    %428 = vector.broadcast %cst_67 : f32 to vector<2x32xf32>
    %429 = arith.subf %428, %421 : vector<2x32xf32>
    %430 = arith.mulf %429, %427 : vector<2x32xf32>
    %431 = arith.mulf %421, %403 : vector<2x32xf32>
    %432 = arith.addf %430, %431 : vector<2x32xf32>
    %cst_68 = arith.constant dense<0.000000e+00> : vector<2x96xf32>
    %433 = tpu.matmul %408, %8, %cst_68 {dimension_numbers = #tpu.dot_dimension_numbers<[1], [0], [0], [1], [0, 0, 1, 1], [], []>} : vector<2x32xf32>, vector<32x96xf32>, vector<2x96xf32> -> vector<2x96xf32>
    %434 = vector.extract_strided_slice %410 {offsets = [0, 0], sizes = [2, 64], strides = [1, 1]} : vector<2x96xf32> to vector<2x64xf32>
    %435 = vector.extract_strided_slice %433 {offsets = [0, 0], sizes = [2, 64], strides = [1, 1]} : vector<2x96xf32> to vector<2x64xf32>
    %436 = arith.addf %434, %435 : vector<2x64xf32>
    %437 = arith.negf %436 : vector<2x64xf32>
    %438 = math.exp %437 : vector<2x64xf32>
    %cst_69 = arith.constant 1.000000e+00 : f32
    %439 = vector.broadcast %cst_69 : f32 to vector<2x64xf32>
    %440 = arith.addf %439, %438 : vector<2x64xf32>
    %441 = arith.divf %439, %440 : vector<2x64xf32>
    %442 = vector.extract_strided_slice %441 {offsets = [0, 0], sizes = [2, 32], strides = [1, 1]} : vector<2x64xf32> to vector<2x32xf32>
    %443 = vector.extract_strided_slice %441 {offsets = [0, 32], sizes = [2, 32], strides = [1, 1]} : vector<2x64xf32> to vector<2x32xf32>
    %444 = vector.extract_strided_slice %410 {offsets = [0, 64], sizes = [2, 32], strides = [1, 1]} : vector<2x96xf32> to vector<2x32xf32>
    %445 = vector.extract_strided_slice %433 {offsets = [0, 64], sizes = [2, 32], strides = [1, 1]} : vector<2x96xf32> to vector<2x32xf32>
    %446 = arith.addf %445, %14 : vector<2x32xf32>
    %447 = arith.mulf %442, %446 : vector<2x32xf32>
    %448 = arith.addf %444, %447 : vector<2x32xf32>
    %449 = math.tanh %448 : vector<2x32xf32>
    %cst_70 = arith.constant 1.000000e+00 : f32
    %450 = vector.broadcast %cst_70 : f32 to vector<2x32xf32>
    %451 = arith.subf %450, %443 : vector<2x32xf32>
    %452 = arith.mulf %451, %449 : vector<2x32xf32>
    %453 = arith.mulf %443, %408 : vector<2x32xf32>
    %454 = arith.addf %452, %453 : vector<2x32xf32>
    %c7_i32_71 = arith.constant 7 : i32
    %455 = vector.broadcast %c7_i32_71 : i32 to vector<2x1xi32>
    %456 = arith.cmpi sgt, %0, %455 : vector<2x1xi32>
    %457 = vector.shape_cast %456 : vector<2x1xi1> to vector<2x1xi1>
    %458 = vector.broadcast %457 : vector<2x1xi1> to vector<2x32xi1>
    %459 = arith.select %458, %432, %403 : vector<2x32xi1>, vector<2x32xf32>
    %c0_i32_72 = arith.constant 0 : i32
    %460 = vector.broadcast %c0_i32_72 : i32 to vector<2x1xi32>
    %461 = arith.cmpi sgt, %0, %460 : vector<2x1xi32>
    %462 = vector.shape_cast %461 : vector<2x1xi1> to vector<2x1xi1>
    %463 = vector.broadcast %462 : vector<2x1xi1> to vector<2x32xi1>
    %464 = arith.select %463, %454, %408 : vector<2x32xi1>, vector<2x32xf32>
    %465 = arith.addf %459, %464 : vector<2x32xf32>
    %c0_73 = arith.constant 0 : index
    %c0_74 = arith.constant 0 : index
    %466 = vector.load %arg8[%c0_73, %c0_74] : memref<32x512xf32, #tpu.memory_space<vmem>>, vector<32x512xf32>
    %cst_75 = arith.constant dense<0.000000e+00> : vector<2x512xf32>
    %467 = tpu.matmul %465, %466, %cst_75 {dimension_numbers = #tpu.dot_dimension_numbers<[1], [0], [0], [1], [0, 0, 1, 1], [], []>} : vector<2x32xf32>, vector<32x512xf32>, vector<2x512xf32> -> vector<2x512xf32>
    %c0_76 = arith.constant 0 : index
    %c0_77 = arith.constant 0 : index
    %468 = vector.load %arg9[%c0_76, %c0_77] : memref<1x512xf32, #tpu.memory_space<vmem>>, vector<1x512xf32>
    %469 = vector.broadcast %468 : vector<1x512xf32> to vector<2x512xf32>
    %470 = arith.addf %467, %469 : vector<2x512xf32>
    %cst_78 = arith.constant dense<0xFF800000> : vector<2xf32>
    %471 = vector.multi_reduction <maximumf>, %470, %cst_78 [1] : vector<2x512xf32> to vector<2xf32>
    %472 = vector.shape_cast %471 : vector<2xf32> to vector<2x1xf32>
    %473 = vector.broadcast %472 : vector<2x1xf32> to vector<2x512xf32>
    %474 = arith.subf %470, %473 : vector<2x512xf32>
    %475 = math.exp %474 : vector<2x512xf32>
    %cst_79 = arith.constant dense<0.000000e+00> : vector<2xf32>
    %476 = vector.multi_reduction <add>, %475, %cst_79 [1] : vector<2x512xf32> to vector<2xf32>
    %477 = vector.shape_cast %476 : vector<2xf32> to vector<2x1xf32>
    %478 = math.log %477 : vector<2x1xf32>
    %479 = arith.addf %472, %478 : vector<2x1xf32>
    %480 = vector.broadcast %479 : vector<2x1xf32> to vector<2x512xf32>
    %481 = arith.subf %470, %480 : vector<2x512xf32>
    %c0_80 = arith.constant 0 : index
    %c0_81 = arith.constant 0 : index
    %482 = vector.load %arg10[%c0_80, %c0_81] : memref<2x512xf32, #tpu.memory_space<vmem>>, vector<2x512xf32>
    tpu.vector_store %arg10[%c0_80, %c0_81], %481 {strides = array<i32>} : memref<2x512xf32, #tpu.memory_space<vmem>>, vector<2x512xf32>,
    return
  }
}

</mosaic_0001>

<llo_original>
// kernel: tpu_custom_call.1
$region0: #{tpu_custom_call.1}
  #allocation0 [shape = 'u32[]', space=smem, size = 0x4, offset = 0x4, fixed_abs, tag = 'smem constant byte address 0x4 - core index']
  #allocation1 [shape = 'u32[72,128]{1,0:T(1,128)}', space=vmem, size = 0x9000, scoped, tag = 'internal scratch']
  %s0 = inlined_call_operand.hbm [shape: f32[16,32], index: 0, kind: input, shape index: {}]
  %s1 = inlined_call_operand.vmem [shape: s32[2,1], index: 1, kind: input, shape index: {}]
  %s2 = inlined_call_operand.hbm [shape: f32[32,192], index: 2, kind: input, shape index: {}]
  %s3 = inlined_call_operand.vmem [shape: f32[1,192], index: 3, kind: input, shape index: {}]
  %s4 = inlined_call_operand.hbm [shape: f32[32,96], index: 4, kind: input, shape index: {}]
  %s5 = inlined_call_operand.hbm [shape: f32[32,96], index: 5, kind: input, shape index: {}]
  %s6 = inlined_call_operand.vmem [shape: f32[1,32], index: 6, kind: input, shape index: {}]
  %s7 = inlined_call_operand.vmem [shape: f32[1,32], index: 7, kind: input, shape index: {}]
  %s8 = inlined_call_operand.hbm [shape: f32[32,512], index: 8, kind: input, shape index: {}]
  %s9 = inlined_call_operand.vmem [shape: f32[1,512], index: 9, kind: input, shape index: {}]
  %s10 = inlined_call_operand.hbm [shape: f32[2,512], index: 10, kind: output, shape index: {}]
  %s11 = sld [smem:[#allocation0]]
  $region70: #{tpu_custom_call.1} parent=0
    _
  %s13 = ssub.s32 1, %s11
  %s14 = scalar_select 0, %s13, %s11
  $region1: #{tpu_custom_call.1} parent=0
    #allocation2 [shape = 'u8[8192]{0}', space=vmem, size = 0x2000, scoped, tag = 'input window, operand 0, single buffered']
    #allocation3 [shape = 's32[1]{0}', space=sflag, size = 0x4, scoped, tag = 'scoped memory for tpu_custom_call.1']
    #allocation4 [shape = 's32[1]{0}', space=sflag, size = 0x4, scoped, tag = 'scoped memory for tpu_custom_call.1']
    #allocation5 [shape = 'u8[32768]{0}', space=vmem, size = 0x8000, scoped, tag = 'input window, operand 2, single buffered']
    #allocation6 [shape = 's32[1]{0}', space=sflag, size = 0x4, scoped, tag = 'scoped memory for tpu_custom_call.1']
    #allocation7 [shape = 'u8[16384]{0}', space=vmem, size = 0x4000, scoped, tag = 'input window, operand 4, single buffered']
    #allocation8 [shape = 'u8[16384]{0}', space=vmem, size = 0x4000, scoped, tag = 'input window, operand 5, single buffered']
    #allocation9 [shape = 's32[1]{0}', space=sflag, size = 0x4, scoped, tag = 'scoped memory for tpu_custom_call.1']
    #allocation10 [shape = 'u8[65536]{0}', space=vmem, size = 0x10000, scoped, tag = 'input window, operand 8, single buffered']
    #allocation11 [shape = 'u8[4096]{0}', space=vmem, size = 0x1000, scoped, tag = 'output window, operand 0, single buffered']
    %15 = vsyncpa [#allocation3], 0
    %16 = vsyncpa [#allocation6], 0
    %17 = vsyncpa [#allocation9], 0
    %18 = vsyncpa [#allocation4], 0
    // Predicated region
    $region2: #{tpu_custom_call.1} parent=1 // pred_check
      _
    $region3: #{tpu_custom_call.1} parent=1 // pred_check_branch
      %20 = sbr.rel (0) target = $region5
    $region4: #{tpu_custom_call.1} parent=1 // pred_region
      %22 = vsyncadd [#allocation3], 0
      %s23 = sshll.u32 %s0, 4
      %s24 = int_to_ptr.hbm [resolvable:$true] %s23
      %s25 = sshll.u32 [#allocation2], 4
      %s26 = int_to_ptr.vmem [resolvable:$true] %s25
      %31 = dma.hbm_to_vmem [thread:$0]  %s24, 256, %s26, [#allocation3], 128, 128, 8
    $region5: #{tpu_custom_call.1} parent=1 // pred_fallthru
      _
    // Predicated region
    $region6: #{tpu_custom_call.1} parent=1 // pred_check
      _
    $region7: #{tpu_custom_call.1} parent=1 // pred_check_branch
      %33 = sbr.rel (0) target = $region9
    $region8: #{tpu_custom_call.1} parent=1 // pred_region
      _
    $region9: #{tpu_custom_call.1} parent=1 // pred_fallthru
      _
    // Predicated region
    $region10: #{tpu_custom_call.1} parent=1 // pred_check
      _
    $region11: #{tpu_custom_call.1} parent=1 // pred_check_branch
      %35 = sbr.rel (0) target = $region13
    $region12: #{tpu_custom_call.1} parent=1 // pred_region
      %37 = vsyncadd [#allocation6], 0
      %s38 = sshll.u32 %s2, 4
      %s39 = int_to_ptr.hbm [resolvable:$true] %s38
      %s40 = sshll.u32 [#allocation5], 4
      %s41 = int_to_ptr.vmem [resolvable:$true] %s40
      %46 = dma.hbm_to_vmem [thread:$0]  %s39, 1024, %s41, [#allocation6], 256, 256, 16
    $region13: #{tpu_custom_call.1} parent=1 // pred_fallthru
      _
    // Predicated region
    $region14: #{tpu_custom_call.1} parent=1 // pred_check
      _
    $region15: #{tpu_custom_call.1} parent=1 // pred_check_branch
      %48 = sbr.rel (0) target = $region17
    $region16: #{tpu_custom_call.1} parent=1 // pred_region
      _
    $region17: #{tpu_custom_call.1} parent=1 // pred_fallthru
      _
    // Predicated region
    $region18: #{tpu_custom_call.1} parent=1 // pred_check
      _
    $region19: #{tpu_custom_call.1} parent=1 // pred_check_branch
      %50 = sbr.rel (0) target = $region21
    $region20: #{tpu_custom_call.1} parent=1 // pred_region
      %52 = vsyncadd [#allocation6], 0
      %s53 = sshll.u32 %s4, 4
      %s54 = int_to_ptr.hbm [resolvable:$true] %s53
      %s55 = sshll.u32 [#allocation7], 4
      %s56 = int_to_ptr.vmem [resolvable:$true] %s55
      %61 = dma.hbm_to_vmem [thread:$0]  %s54, 512, %s56, [#allocation6], 128, 128, 8
    $region21: #{tpu_custom_call.1} parent=1 // pred_fallthru
      _
    // Predicated region
    $region22: #{tpu_custom_call.1} parent=1 // pred_check
      _
    $region23: #{tpu_custom_call.1} parent=1 // pred_check_branch
      %63 = sbr.rel (0) target = $region25
    $region24: #{tpu_custom_call.1} parent=1 // pred_region
      %65 = vsyncadd [#allocation9], 0
      %s66 = sshll.u32 %s5, 4
      %s67 = int_to_ptr.hbm [resolvable:$true] %s66
      %s68 = sshll.u32 [#allocation8], 4
      %s69 = int_to_ptr.vmem [resolvable:$true] %s68
      %74 = dma.hbm_to_vmem [thread:$0]  %s67, 512, %s69, [#allocation9], 128, 128, 8
    $region25: #{tpu_custom_call.1} parent=1 // pred_fallthru
      _
    // Predicated region
    $region26: #{tpu_custom_call.1} parent=1 // pred_check
      _
    $region27: #{tpu_custom_call.1} parent=1 // pred_check_branch
      %76 = sbr.rel (0) target = $region29
    $region28: #{tpu_custom_call.1} parent=1 // pred_region
      _
    $region29: #{tpu_custom_call.1} parent=1 // pred_fallthru
      _
    // Predicated region
    $region30: #{tpu_custom_call.1} parent=1 // pred_check
      _
    $region31: #{tpu_custom_call.1} parent=1 // pred_check_branch
      %78 = sbr.rel (0) target = $region33
    $region32: #{tpu_custom_call.1} parent=1 // pred_region
      _
    $region33: #{tpu_custom_call.1} parent=1 // pred_fallthru
      _
    // Predicated region
    $region34: #{tpu_custom_call.1} parent=1 // pred_check
      _
    $region35: #{tpu_custom_call.1} parent=1 // pred_check_branch
      %80 = sbr.rel (0) target = $region37
    $region36: #{tpu_custom_call.1} parent=1 // pred_region
      %82 = vsyncadd [#allocation9], 0
      %s83 = sshll.u32 %s8, 4
      %s84 = int_to_ptr.hbm [resolvable:$true] %s83
      %s85 = sshll.u32 [#allocation10], 4
      %s86 = int_to_ptr.vmem [resolvable:$true] %s85
      %91 = dma.hbm_to_vmem [thread:$0]  %s84, 2048, %s86, [#allocation9], 512, 512, 32
    $region37: #{tpu_custom_call.1} parent=1 // pred_fallthru
      _
    // Predicated region
    $region38: #{tpu_custom_call.1} parent=1 // pred_check
      _
    $region39: #{tpu_custom_call.1} parent=1 // pred_check_branch
      %93 = sbr.rel (0) target = $region41
    $region40: #{tpu_custom_call.1} parent=1 // pred_region
      _
    $region41: #{tpu_custom_call.1} parent=1 // pred_fallthru
      _
    // Predicated region
    $region42: #{tpu_custom_call.1} parent=1 // pred_check
      _
    $region43: #{tpu_custom_call.1} parent=1 // pred_check_branch
      %95 = sbr.rel (0) target = $region45
    $region44: #{tpu_custom_call.1} parent=1 // pred_region
      %97 = dma.done [#allocation3], 256
    $region45: #{tpu_custom_call.1} parent=1 // pred_fallthru
      _
    // Predicated region
    $region46: #{tpu_custom_call.1} parent=1 // pred_check
      _
    $region47: #{tpu_custom_call.1} parent=1 // pred_check_branch
      %99 = sbr.rel (0) target = $region49
    $region48: #{tpu_custom_call.1} parent=1 // pred_region
      %101 = dma.done [#allocation6], 1024
    $region49: #{tpu_custom_call.1} parent=1 // pred_fallthru
      _
    // Predicated region
    $region50: #{tpu_custom_call.1} parent=1 // pred_check
      _
    $region51: #{tpu_custom_call.1} parent=1 // pred_check_branch
      %103 = sbr.rel (0) target = $region53
    $region52: #{tpu_custom_call.1} parent=1 // pred_region
      %105 = dma.done [#allocation6], 512
    $region53: #{tpu_custom_call.1} parent=1 // pred_fallthru
      _
    // Predicated region
    $region54: #{tpu_custom_call.1} parent=1 // pred_check
      _
    $region55: #{tpu_custom_call.1} parent=1 // pred_check_branch
      %107 = sbr.rel (0) target = $region57
    $region56: #{tpu_custom_call.1} parent=1 // pred_region
      %109 = dma.done [#allocation9], 512
    $region57: #{tpu_custom_call.1} parent=1 // pred_fallthru
      _
    // Predicated region
    $region58: #{tpu_custom_call.1} parent=1 // pred_check
      _
    $region59: #{tpu_custom_call.1} parent=1 // pred_check_branch
      %111 = sbr.rel (0) target = $region61
    $region60: #{tpu_custom_call.1} parent=1 // pred_region
      %113 = dma.done [#allocation9], 2048
    $region61: #{tpu_custom_call.1} parent=1 // pred_fallthru
      _
    %v114 = vld [vmem:[%s1] sm:$0x3]
    %v115 = vld [vmem:[#allocation2] sm:$0xff]
    %v116 = vld [vmem:[#allocation2 + $0x8] sm:$0xff]
    %v117 = vld [vmem:[#allocation5] sm:$0xff]
    %v118 = vld [vmem:[#allocation5 + $0x8] sm:$0xff]
    %v119 = vld [vmem:[#allocation5 + $0x10] sm:$0xff]
    %v120 = vld [vmem:[#allocation5 + $0x18] sm:$0xff]
    %v121 = vld [vmem:[#allocation5 + $0x20] sm:$0xff]
    %v122 = vld [vmem:[#allocation5 + $0x28] sm:$0xff]
    %v123 = vld [vmem:[#allocation5 + $0x30] sm:$0xff]
    %v124 = vld [vmem:[#allocation5 + $0x38] sm:$0xff]
    %v125 = vld [vmem:[%s3] sm:$0x3]
    %v127 = vperm.slane %v125, 0
    %v128 = vperm.slane %v125, 1
    %vm131 = vcmask 261120
    %v133 = vsel %vm131, %v115, 0
    %v136 = vsel %vm131, %v116, 0
    %138 = vmatpush.msra.mxu0 0.0
    %139 = vmatpush.msra.mxu0 0.0
    %140 = vmatpush.msra.mxu0 0.0
    %141 = vmatpush.msra.mxu0 0.0
    %142 = vmatpush.msra.mxu0 0.0
    %143 = vmatpush.msra.mxu0 0.0
    %144 = vmatpush.msra.mxu0 0.0
    %145 = vmatpush.msra.mxu0 0.0
    %146 = vmatpush.msra.mxu0 0.0
    %147 = vmatpush.msra.mxu0 0.0
    %148 = vmatpush.msra.mxu0 0.0
    %149 = vmatpush.msra.mxu0 0.0
    %150 = vmatpush.msra.mxu0 %v123
    %151 = vmatpush.msra.mxu0 %v121
    %152 = vmatpush.msra.mxu0 %v119
    %153 = vmatpush.msra.mxu0 %v117
    %154 = vmatmul.f32.gmra.mxu0 %v133
    %v155 = vpop.f32.mrf.mxu0
    %v156 = vadd.f32 %v127, %v155
    %157 = vmatmul.f32.gmra.mxu0 %v136
    %v158 = vpop.f32.mrf.mxu0
    %v159 = vadd.f32 %v127, %v158
    %160 = vdwg.mxu0
    %161 = vmatpush.msra.mxu0 0.0
    %162 = vmatpush.msra.mxu0 0.0
    %163 = vmatpush.msra.mxu0 0.0
    %164 = vmatpush.msra.mxu0 0.0
    %165 = vmatpush.msra.mxu0 0.0
    %166 = vmatpush.msra.mxu0 0.0
    %167 = vmatpush.msra.mxu0 0.0
    %168 = vmatpush.msra.mxu0 0.0
    %169 = vmatpush.msra.mxu0 0.0
    %170 = vmatpush.msra.mxu0 0.0
    %171 = vmatpush.msra.mxu0 0.0
    %172 = vmatpush.msra.mxu0 0.0
    %173 = vmatpush.msra.mxu0 %v124
    %174 = vmatpush.msra.mxu0 %v122
    %175 = vmatpush.msra.mxu0 %v120
    %176 = vmatpush.msra.mxu0 %v118
    %177 = vmatmul.f32.gmra.mxu0 %v133
    %v178 = vpop.f32.mrf.mxu0
    %v179 = vadd.f32 %v128, %v178
    %180 = vmatmul.f32.gmra.mxu0 %v136
    %v181 = vpop.f32.mrf.mxu0
    %v182 = vadd.f32 %v128, %v181
    %183 = vdwg.mxu0
    %v184 = vld [vmem:[#allocation7] sm:$0xff]
    %v185 = vld [vmem:[#allocation7 + $0x8] sm:$0xff]
    %v186 = vld [vmem:[#allocation7 + $0x10] sm:$0xff]
    %v187 = vld [vmem:[#allocation7 + $0x18] sm:$0xff]
    %v188 = vld [vmem:[#allocation8] sm:$0xff]
    %v189 = vld [vmem:[#allocation8 + $0x8] sm:$0xff]
    %v190 = vld [vmem:[#allocation8 + $0x10] sm:$0xff]
    %v191 = vld [vmem:[#allocation8 + $0x18] sm:$0xff]
    %v192 = vld [vmem:[%s6] sm:$0x1]
    %v194 = vperm.slane %v192, 0
    %v195 = vld [vmem:[%s7] sm:$0x1]
    %v197 = vperm.slane %v195, 0
    %v199 = vsel %vm131, 0.0, 0
    %201 = vmatpush.msra.mxu0 0.0
    %202 = vmatpush.msra.mxu0 0.0
    %203 = vmatpush.msra.mxu0 0.0
    %204 = vmatpush.msra.mxu0 0.0
    %205 = vmatpush.msra.mxu0 0.0
    %206 = vmatpush.msra.mxu0 0.0
    %207 = vmatpush.msra.mxu0 0.0
    %208 = vmatpush.msra.mxu0 0.0
    %209 = vmatpush.msra.mxu0 0.0
    %210 = vmatpush.msra.mxu0 0.0
    %211 = vmatpush.msra.mxu0 0.0
    %212 = vmatpush.msra.mxu0 0.0
    %213 = vmatpush.msra.mxu0 %v187
    %214 = vmatpush.msra.mxu0 %v186
    %215 = vmatpush.msra.mxu0 %v185
    %216 = vmatpush.msra.mxu0 %v184
    %217 = vmatmul.f32.gmra.mxu0 %v199
    %v218 = vpop.f32.mrf.mxu0
    %v219 = vadd.f32 0.0, %v218
    %220 = vdwg.mxu0
    %v221 = vadd.f32 %v156, %v219
    %v222 = vxor.u32 %v221, 2147483648
    %v223 = vmul.f32 %v222, 1.442695
    %v224 = vpow.pop %v223
    %v225 = vadd.f32 %v224, 1.0
    %v226 = vrcp.pop %v225
    %v227 = vmul.f32 %v225, %v226
    %v228 = vsub.f32 1.0, %v227
    %v229 = vmul.f32 %v226, %v228
    %v230 = vadd.f32 %v226, %v229
    %vm231 = vweird.f32 %v225
    %vm232 = vweird.f32 %v226
    %vm233 = vmor %vm231, %vm232
    %v234 = vsel %vm233, %v226, %v230
    %v235 = vand.u32 2147483647, %v225
    %vm236 = vcmp.eq.f32.partialorder %v235, 8.507059e+37
    %v237 = vand.u32 %v225, 2147483648
    %v238 = vor.u32 1.1754944e-38, %v237
    %v239 = vsel %vm236, %v238, %v234
    %v240 = vmul.f32 1.0, %v239
    %241 = vrot.lane.b32.xlu0 %v194, 64
    %v242 = vpop.permute.xlu0 %241
    %v244 = vadd.f32 %v219, %v242
    %246 = vrot.lane.b32.xlu0 %v244, 64
    %v247 = vpop.permute.xlu0 %246
    %v249 = vmul.f32 %v240, %v247
    %251 = vrot.lane.b32.xlu0 %v249, 64
    %v252 = vpop.permute.xlu0 %251
    %v254 = vadd.f32 %v156, %v252
    %v255 = vtanh.pop %v254
    %v256 = vsub.f32 1.0, %v240
    %258 = vrot.lane.b32.xlu0 %v255, 96
    %v259 = vpop.permute.xlu0 %258
    %v261 = vmul.f32 %v256, %v259
    %v262 = vmul.f32 %v240, 0.0
    %v263 = vadd.f32 %v261, %v262
    %264 = vmatpush.msra.mxu0 0.0
    %265 = vmatpush.msra.mxu0 0.0
    %266 = vmatpush.msra.mxu0 0.0
    %267 = vmatpush.msra.mxu0 0.0
    %268 = vmatpush.msra.mxu0 0.0
    %269 = vmatpush.msra.mxu0 0.0
    %270 = vmatpush.msra.mxu0 0.0
    %271 = vmatpush.msra.mxu0 0.0
    %272 = vmatpush.msra.mxu0 0.0
    %273 = vmatpush.msra.mxu0 0.0
    %274 = vmatpush.msra.mxu0 0.0
    %275 = vmatpush.msra.mxu0 0.0
    %276 = vmatpush.msra.mxu0 %v191
    %277 = vmatpush.msra.mxu0 %v190
    %278 = vmatpush.msra.mxu0 %v189
    %279 = vmatpush.msra.mxu0 %v188
    %280 = vmatmul.f32.gmra.mxu0 %v199
    %v281 = vpop.f32.mrf.mxu0
    %v282 = vadd.f32 0.0, %v281
    %283 = vdwg.mxu0
    %v285 = vrot.slane %v282, 2
    %286 = vrot.lane.b32.xlu0 %v285, 96
    %v287 = vpop.permute.xlu0 %286
    %v289 = vadd.f32 %v159, %v287
    %v290 = vadd.f32 %v182, %v287
    %v291 = vxor.u32 %v289, 2147483648
    %v292 = vxor.u32 %v290, 2147483648
    %v293 = vmul.f32 %v291, 1.442695
    %v294 = vpow.pop %v293
    %v295 = vmul.f32 %v292, 1.442695
    %v296 = vpow.pop %v295
    %v297 = vadd.f32 %v294, 1.0
    %v298 = vadd.f32 %v296, 1.0
    %v299 = vrcp.pop %v297
    %v300 = vmul.f32 %v297, %v299
    %v301 = vsub.f32 1.0, %v300
    %v302 = vmul.f32 %v299, %v301
    %v303 = vadd.f32 %v299, %v302
    %vm304 = vweird.f32 %v297
    %vm305 = vweird.f32 %v299
    %vm306 = vmor %vm304, %vm305
    %v307 = vsel %vm306, %v299, %v303
    %v308 = vand.u32 2147483647, %v297
    %vm309 = vcmp.eq.f32.partialorder %v308, 8.507059e+37
    %v310 = vand.u32 %v297, 2147483648
    %v311 = vor.u32 1.1754944e-38, %v310
    %v312 = vsel %vm309, %v311, %v307
    %v313 = vmul.f32 1.0, %v312
    %v314 = vrcp.pop %v298
    %v315 = vmul.f32 %v298, %v314
    %v316 = vsub.f32 1.0, %v315
    %v317 = vmul.f32 %v314, %v316
    %v318 = vadd.f32 %v314, %v317
    %vm319 = vweird.f32 %v298
    %vm320 = vweird.f32 %v314
    %vm321 = vmor %vm319, %vm320
    %v322 = vsel %vm321, %v314, %v318
    %v323 = vand.u32 2147483647, %v298
    %vm324 = vcmp.eq.f32.partialorder %v323, 8.507059e+37
    %v325 = vand.u32 %v298, 2147483648
    %v326 = vor.u32 1.1754944e-38, %v325
    %v327 = vsel %vm324, %v326, %v322
    %v328 = vmul.f32 1.0, %v327
    %329 = vrot.lane.b32.xlu0 %v197, 64
    %v330 = vpop.permute.xlu0 %329
    %v332 = vadd.f32 %v282, %v330
    %v334 = vrot.slane %v332, 2
    %335 = vrot.lane.b32.xlu0 %v334, 32
    %v336 = vpop.permute.xlu0 %335
    %v338 = vmul.f32 %v313, %v336
    %340 = vrot.lane.b32.xlu0 %v338, 64
    %v341 = vpop.permute.xlu0 %340
    %v343 = vadd.f32 %v182, %v341
    %v344 = vtanh.pop %v343
    %v345 = vsub.f32 1.0, %v328
    %347 = vrot.lane.b32.xlu0 %v344, 96
    %v348 = vpop.permute.xlu0 %347
    %v350 = vmul.f32 %v345, %v348
    %v351 = vmul.f32 %v328, 0.0
    %v352 = vadd.f32 %v350, %v351
    %vm353 = vcmp.gt.s32.totalorder %v114, 0
    %v354 = vsel %vm353, 1, 0
    %355 = vset.pattern.permute.xlu0 0
    %356 = vperm.xlu0 %355, %v354
    %v357 = vpop.permute.xlu0 %356
    %vm358 = vcmp.eq.s32.totalorder %v357, 1
    %v359 = vsel %vm358, %v263, 0.0
    %vm360 = vcmp.gt.s32.totalorder %v114, 7
    %v361 = vsel %vm360, 1, 0
    %362 = vset.pattern.permute.xlu0 0
    %363 = vperm.xlu0 %362, %v361
    %v364 = vpop.permute.xlu0 %363
    %vm365 = vcmp.eq.s32.totalorder %v364, 1
    %v367 = vrot.slane %v352, 6
    %v369 = vsel %vm365, %v367, 0.0
    %371 = vrot.lane.b32.xlu0 %v359, 96
    %v372 = vpop.permute.xlu0 %371
    %v373 = vsel %vm131, %v372, 0
    %375 = vmatpush.msra.mxu0 0.0
    %376 = vmatpush.msra.mxu0 0.0
    %377 = vmatpush.msra.mxu0 0.0
    %378 = vmatpush.msra.mxu0 0.0
    %379 = vmatpush.msra.mxu0 0.0
    %380 = vmatpush.msra.mxu0 0.0
    %381 = vmatpush.msra.mxu0 0.0
    %382 = vmatpush.msra.mxu0 0.0
    %383 = vmatpush.msra.mxu0 0.0
    %384 = vmatpush.msra.mxu0 0.0
    %385 = vmatpush.msra.mxu0 0.0
    %386 = vmatpush.msra.mxu0 0.0
    %387 = vmatpush.msra.mxu0 %v187
    %388 = vmatpush.msra.mxu0 %v186
    %389 = vmatpush.msra.mxu0 %v185
    %390 = vmatpush.msra.mxu0 %v184
    %391 = vmatmul.f32.gmra.mxu0 %v373
    %v392 = vpop.f32.mrf.mxu0
    %v393 = vadd.f32 0.0, %v392
    %394 = vdwg.mxu0
    %v396 = vrot.slane %v393, 6
    %v398 = vadd.f32 %v156, %v396
    %v399 = vxor.u32 %v398, 2147483648
    %v400 = vmul.f32 %v399, 1.442695
    %v401 = vpow.pop %v400
    %v402 = vadd.f32 %v401, 1.0
    %v403 = vrcp.pop %v402
    %v404 = vmul.f32 %v402, %v403
    %v405 = vsub.f32 1.0, %v404
    %v406 = vmul.f32 %v403, %v405
    %v407 = vadd.f32 %v403, %v406
    %vm408 = vweird.f32 %v402
    %vm409 = vweird.f32 %v403
    %vm410 = vmor %vm408, %vm409
    %v411 = vsel %vm410, %v403, %v407
    %v412 = vand.u32 2147483647, %v402
    %vm413 = vcmp.eq.f32.partialorder %v412, 8.507059e+37
    %v414 = vand.u32 %v402, 2147483648
    %v415 = vor.u32 1.1754944e-38, %v414
    %v416 = vsel %vm413, %v415, %v411
    %v417 = vmul.f32 1.0, %v416
    %v418 = vadd.f32 %v393, %v242
    %v420 = vrot.slane %v418, 6
    %421 = vrot.lane.b32.xlu0 %v420, 64
    %v422 = vpop.permute.xlu0 %421
    %v424 = vmul.f32 %v417, %v422
    %426 = vrot.lane.b32.xlu0 %v424, 64
    %v427 = vpop.permute.xlu0 %426
    %v429 = vadd.f32 %v156, %v427
    %v430 = vtanh.pop %v429
    %v431 = vsub.f32 1.0, %v417
    %433 = vrot.lane.b32.xlu0 %v430, 96
    %v434 = vpop.permute.xlu0 %433
    %v436 = vmul.f32 %v431, %v434
    %v437 = vrot.slane %v359, 6
    %v439 = vmul.f32 %v417, %v437
    %v440 = vadd.f32 %v436, %v439
    %v442 = vsel %vm131, %v369, 0
    %444 = vmatpush.msra.mxu0 0.0
    %445 = vmatpush.msra.mxu0 0.0
    %446 = vmatpush.msra.mxu0 0.0
    %447 = vmatpush.msra.mxu0 0.0
    %448 = vmatpush.msra.mxu0 0.0
    %449 = vmatpush.msra.mxu0 0.0
    %450 = vmatpush.msra.mxu0 0.0
    %451 = vmatpush.msra.mxu0 0.0
    %452 = vmatpush.msra.mxu0 0.0
    %453 = vmatpush.msra.mxu0 0.0
    %454 = vmatpush.msra.mxu0 0.0
    %455 = vmatpush.msra.mxu0 0.0
    %456 = vmatpush.msra.mxu0 %v191
    %457 = vmatpush.msra.mxu0 %v190
    %458 = vmatpush.msra.mxu0 %v189
    %459 = vmatpush.msra.mxu0 %v188
    %460 = vmatmul.f32.gmra.mxu0 %v442
    %v461 = vpop.f32.mrf.mxu0
    %v462 = vadd.f32 0.0, %v461
    %463 = vdwg.mxu0
    %v465 = vrot.slane %v462, 4
    %466 = vrot.lane.b32.xlu0 %v465, 96
    %v467 = vpop.permute.xlu0 %466
    %v469 = vadd.f32 %v159, %v467
    %v470 = vadd.f32 %v182, %v467
    %v471 = vxor.u32 %v469, 2147483648
    %v472 = vxor.u32 %v470, 2147483648
    %v473 = vmul.f32 %v471, 1.442695
    %v474 = vpow.pop %v473
    %v475 = vmul.f32 %v472, 1.442695
    %v476 = vpow.pop %v475
    %v477 = vadd.f32 %v474, 1.0
    %v478 = vadd.f32 %v476, 1.0
    %v479 = vrcp.pop %v477
    %v480 = vmul.f32 %v477, %v479
    %v481 = vsub.f32 1.0, %v480
    %v482 = vmul.f32 %v479, %v481
    %v483 = vadd.f32 %v479, %v482
    %vm484 = vweird.f32 %v477
    %vm485 = vweird.f32 %v479
    %vm486 = vmor %vm484, %vm485
    %v487 = vsel %vm486, %v479, %v483
    %v488 = vand.u32 2147483647, %v477
    %vm489 = vcmp.eq.f32.partialorder %v488, 8.507059e+37
    %v490 = vand.u32 %v477, 2147483648
    %v491 = vor.u32 1.1754944e-38, %v490
    %v492 = vsel %vm489, %v491, %v487
    %v493 = vmul.f32 1.0, %v492
    %v494 = vrcp.pop %v478
    %v495 = vmul.f32 %v478, %v494
    %v496 = vsub.f32 1.0, %v495
    %v497 = vmul.f32 %v494, %v496
    %v498 = vadd.f32 %v494, %v497
    %vm499 = vweird.f32 %v478
    %vm500 = vweird.f32 %v494
    %vm501 = vmor %vm499, %vm500
    %v502 = vsel %vm501, %v494, %v498
    %v503 = vand.u32 2147483647, %v478
    %vm504 = vcmp.eq.f32.partialorder %v503, 8.507059e+37
    %v505 = vand.u32 %v478, 2147483648
    %v506 = vor.u32 1.1754944e-38, %v505
    %v507 = vsel %vm504, %v506, %v502
    %v508 = vmul.f32 1.0, %v507
    %v509 = vadd.f32 %v462, %v330
    %v511 = vrot.slane %v509, 4
    %512 = vrot.lane.b32.xlu0 %v511, 32
    %v513 = vpop.permute.xlu0 %512
    %v515 = vmul.f32 %v493, %v513
    %517 = vrot.lane.b32.xlu0 %v515, 64
    %v518 = vpop.permute.xlu0 %517
    %v520 = vadd.f32 %v182, %v518
    %v521 = vtanh.pop %v520
    %v522 = vsub.f32 1.0, %v508
    %524 = vrot.lane.b32.xlu0 %v521, 96
    %v525 = vpop.permute.xlu0 %524
    %v527 = vmul.f32 %v522, %v525
    %v528 = vrot.slane %v369, 4
    %v530 = vmul.f32 %v508, %v528
    %v531 = vadd.f32 %v527, %v530
    %vm532 = vcmp.gt.s32.totalorder %v114, 1
    %v533 = vsel %vm532, 1, 0
    %534 = vset.pattern.permute.xlu0 0
    %535 = vperm.xlu0 %534, %v533
    %v536 = vpop.permute.xlu0 %535
    %vm537 = vcmp.eq.s32.totalorder %v536, 1
    %v539 = vrot.slane %v440, 2
    %540 = vrot.lane.b32.xlu0 %v539, 96
    %v541 = vpop.permute.xlu0 %540
    %v544 = vsel %vm537, %v541, %v372
    %vm545 = vcmp.gt.s32.totalorder %v114, 6
    %v546 = vsel %vm545, 1, 0
    %547 = vset.pattern.permute.xlu0 0
    %548 = vperm.xlu0 %547, %v546
    %v549 = vpop.permute.xlu0 %548
    %vm550 = vcmp.eq.s32.totalorder %v549, 1
    %v552 = vrot.slane %v531, 4
    %v554 = vsel %vm550, %v552, %v369
    %v556 = vsel %vm131, %v544, 0
    %558 = vmatpush.msra.mxu0 0.0
    %559 = vmatpush.msra.mxu0 0.0
    %560 = vmatpush.msra.mxu0 0.0
    %561 = vmatpush.msra.mxu0 0.0
    %562 = vmatpush.msra.mxu0 0.0
    %563 = vmatpush.msra.mxu0 0.0
    %564 = vmatpush.msra.mxu0 0.0
    %565 = vmatpush.msra.mxu0 0.0
    %566 = vmatpush.msra.mxu0 0.0
    %567 = vmatpush.msra.mxu0 0.0
    %568 = vmatpush.msra.mxu0 0.0
    %569 = vmatpush.msra.mxu0 0.0
    %570 = vmatpush.msra.mxu0 %v187
    %571 = vmatpush.msra.mxu0 %v186
    %572 = vmatpush.msra.mxu0 %v185
    %573 = vmatpush.msra.mxu0 %v184
    %574 = vmatmul.f32.gmra.mxu0 %v556
    %v575 = vpop.f32.mrf.mxu0
    %v576 = vadd.f32 0.0, %v575
    %577 = vdwg.mxu0
    %v579 = vrot.slane %v576, 4
    %v581 = vadd.f32 %v156, %v579
    %v582 = vxor.u32 %v581, 2147483648
    %v583 = vmul.f32 %v582, 1.442695
    %v584 = vpow.pop %v583
    %v585 = vadd.f32 %v584, 1.0
    %v586 = vrcp.pop %v585
    %v587 = vmul.f32 %v585, %v586
    %v588 = vsub.f32 1.0, %v587
    %v589 = vmul.f32 %v586, %v588
    %v590 = vadd.f32 %v586, %v589
    %vm591 = vweird.f32 %v585
    %vm592 = vweird.f32 %v586
    %vm593 = vmor %vm591, %vm592
    %v594 = vsel %vm593, %v586, %v590
    %v595 = vand.u32 2147483647, %v585
    %vm596 = vcmp.eq.f32.partialorder %v595, 8.507059e+37
    %v597 = vand.u32 %v585, 2147483648
    %v598 = vor.u32 1.1754944e-38, %v597
    %v599 = vsel %vm596, %v598, %v594
    %v600 = vmul.f32 1.0, %v599
    %v601 = vadd.f32 %v576, %v242
    %v603 = vrot.slane %v601, 4
    %604 = vrot.lane.b32.xlu0 %v603, 64
    %v605 = vpop.permute.xlu0 %604
    %v607 = vmul.f32 %v600, %v605
    %609 = vrot.lane.b32.xlu0 %v607, 64
    %v610 = vpop.permute.xlu0 %609
    %v612 = vadd.f32 %v156, %v610
    %v613 = vtanh.pop %v612
    %v614 = vsub.f32 1.0, %v600
    %616 = vrot.lane.b32.xlu0 %v613, 96
    %v617 = vpop.permute.xlu0 %616
    %v619 = vmul.f32 %v614, %v617
    %v620 = vrot.slane %v544, 4
    %621 = vrot.lane.b32.xlu0 %v620, 32
    %v622 = vpop.permute.xlu0 %621
    %v624 = vmul.f32 %v600, %v622
    %v625 = vadd.f32 %v619, %v624
    %v627 = vsel %vm131, %v554, 0
    %629 = vmatpush.msra.mxu0 0.0
    %630 = vmatpush.msra.mxu0 0.0
    %631 = vmatpush.msra.mxu0 0.0
    %632 = vmatpush.msra.mxu0 0.0
    %633 = vmatpush.msra.mxu0 0.0
    %634 = vmatpush.msra.mxu0 0.0
    %635 = vmatpush.msra.mxu0 0.0
    %636 = vmatpush.msra.mxu0 0.0
    %637 = vmatpush.msra.mxu0 0.0
    %638 = vmatpush.msra.mxu0 0.0
    %639 = vmatpush.msra.mxu0 0.0
    %640 = vmatpush.msra.mxu0 0.0
    %641 = vmatpush.msra.mxu0 %v191
    %642 = vmatpush.msra.mxu0 %v190
    %643 = vmatpush.msra.mxu0 %v189
    %644 = vmatpush.msra.mxu0 %v188
    %645 = vmatmul.f32.gmra.mxu0 %v627
    %v646 = vpop.f32.mrf.mxu0
    %v647 = vadd.f32 0.0, %v646
    %648 = vdwg.mxu0
    %v650 = vrot.slane %v647, 6
    %651 = vrot.lane.b32.xlu0 %v650, 96
    %v652 = vpop.permute.xlu0 %651
    %v654 = vadd.f32 %v159, %v652
    %v655 = vadd.f32 %v182, %v652
    %v656 = vxor.u32 %v654, 2147483648
    %v657 = vxor.u32 %v655, 2147483648
    %v658 = vmul.f32 %v656, 1.442695
    %v659 = vpow.pop %v658
    %v660 = vmul.f32 %v657, 1.442695
    %v661 = vpow.pop %v660
    %v662 = vadd.f32 %v659, 1.0
    %v663 = vadd.f32 %v661, 1.0
    %v664 = vrcp.pop %v662
    %v665 = vmul.f32 %v662, %v664
    %v666 = vsub.f32 1.0, %v665
    %v667 = vmul.f32 %v664, %v666
    %v668 = vadd.f32 %v664, %v667
    %vm669 = vweird.f32 %v662
    %vm670 = vweird.f32 %v664
    %vm671 = vmor %vm669, %vm670
    %v672 = vsel %vm671, %v664, %v668
    %v673 = vand.u32 2147483647, %v662
    %vm674 = vcmp.eq.f32.partialorder %v673, 8.507059e+37
    %v675 = vand.u32 %v662, 2147483648
    %v676 = vor.u32 1.1754944e-38, %v675
    %v677 = vsel %vm674, %v676, %v672
    %v678 = vmul.f32 1.0, %v677
    %v679 = vrcp.pop %v663
    %v680 = vmul.f32 %v663, %v679
    %v681 = vsub.f32 1.0, %v680
    %v682 = vmul.f32 %v679, %v681
    %v683 = vadd.f32 %v679, %v682
    %vm684 = vweird.f32 %v663
    %vm685 = vweird.f32 %v679
    %vm686 = vmor %vm684, %vm685
    %v687 = vsel %vm686, %v679, %v683
    %v688 = vand.u32 2147483647, %v663
    %vm689 = vcmp.eq.f32.partialorder %v688, 8.507059e+37
    %v690 = vand.u32 %v663, 2147483648
    %v691 = vor.u32 1.1754944e-38, %v690
    %v692 = vsel %vm689, %v691, %v687
    %v693 = vmul.f32 1.0, %v692
    %v694 = vadd.f32 %v647, %v330
    %v696 = vrot.slane %v694, 6
    %697 = vrot.lane.b32.xlu0 %v696, 32
    %v698 = vpop.permute.xlu0 %697
    %v700 = vmul.f32 %v678, %v698
    %702 = vrot.lane.b32.xlu0 %v700, 64
    %v703 = vpop.permute.xlu0 %702
    %v705 = vadd.f32 %v182, %v703
    %v706 = vtanh.pop %v705
    %v707 = vsub.f32 1.0, %v693
    %709 = vrot.lane.b32.xlu0 %v706, 96
    %v710 = vpop.permute.xlu0 %709
    %v712 = vmul.f32 %v707, %v710
    %v713 = vrot.slane %v554, 6
    %v715 = vmul.f32 %v693, %v713
    %v716 = vadd.f32 %v712, %v715
    %vm717 = vcmp.gt.s32.totalorder %v114, 2
    %v718 = vsel %vm717, 1, 0
    %719 = vset.pattern.permute.xlu0 0
    %720 = vperm.xlu0 %719, %v718
    %v721 = vpop.permute.xlu0 %720
    %vm722 = vcmp.eq.s32.totalorder %v721, 1
    %v724 = vrot.slane %v625, 4
    %725 = vrot.lane.b32.xlu0 %v724, 96
    %v726 = vpop.permute.xlu0 %725
    %v728 = vsel %vm722, %v726, %v544
    %vm729 = vcmp.gt.s32.totalorder %v114, 5
    %v730 = vsel %vm729, 1, 0
    %731 = vset.pattern.permute.xlu0 0
    %732 = vperm.xlu0 %731, %v730
    %v733 = vpop.permute.xlu0 %732
    %vm734 = vcmp.eq.s32.totalorder %v733, 1
    %v736 = vrot.slane %v716, 2
    %v738 = vsel %vm734, %v736, %v554
    %v740 = vsel %vm131, %v728, 0
    %742 = vmatpush.msra.mxu0 0.0
    %743 = vmatpush.msra.mxu0 0.0
    %744 = vmatpush.msra.mxu0 0.0
    %745 = vmatpush.msra.mxu0 0.0
    %746 = vmatpush.msra.mxu0 0.0
    %747 = vmatpush.msra.mxu0 0.0
    %748 = vmatpush.msra.mxu0 0.0
    %749 = vmatpush.msra.mxu0 0.0
    %750 = vmatpush.msra.mxu0 0.0
    %751 = vmatpush.msra.mxu0 0.0
    %752 = vmatpush.msra.mxu0 0.0
    %753 = vmatpush.msra.mxu0 0.0
    %754 = vmatpush.msra.mxu0 %v187
    %755 = vmatpush.msra.mxu0 %v186
    %756 = vmatpush.msra.mxu0 %v185
    %757 = vmatpush.msra.mxu0 %v184
    %758 = vmatmul.f32.gmra.mxu0 %v740
    %v759 = vpop.f32.mrf.mxu0
    %v760 = vadd.f32 0.0, %v759
    %761 = vdwg.mxu0
    %v763 = vrot.slane %v760, 2
    %v765 = vadd.f32 %v156, %v763
    %v766 = vxor.u32 %v765, 2147483648
    %v767 = vmul.f32 %v766, 1.442695
    %v768 = vpow.pop %v767
    %v769 = vadd.f32 %v768, 1.0
    %v770 = vrcp.pop %v769
    %v771 = vmul.f32 %v769, %v770
    %v772 = vsub.f32 1.0, %v771
    %v773 = vmul.f32 %v770, %v772
    %v774 = vadd.f32 %v770, %v773
    %vm775 = vweird.f32 %v769
    %vm776 = vweird.f32 %v770
    %vm777 = vmor %vm775, %vm776
    %v778 = vsel %vm777, %v770, %v774
    %v779 = vand.u32 2147483647, %v769
    %vm780 = vcmp.eq.f32.partialorder %v779, 8.507059e+37
    %v781 = vand.u32 %v769, 2147483648
    %v782 = vor.u32 1.1754944e-38, %v781
    %v783 = vsel %vm780, %v782, %v778
    %v784 = vmul.f32 1.0, %v783
    %v785 = vadd.f32 %v760, %v242
    %v787 = vrot.slane %v785, 2
    %788 = vrot.lane.b32.xlu0 %v787, 64
    %v789 = vpop.permute.xlu0 %788
    %v791 = vmul.f32 %v784, %v789
    %793 = vrot.lane.b32.xlu0 %v791, 64
    %v794 = vpop.permute.xlu0 %793
    %v796 = vadd.f32 %v156, %v794
    %v797 = vtanh.pop %v796
    %v798 = vsub.f32 1.0, %v784
    %800 = vrot.lane.b32.xlu0 %v797, 96
    %v801 = vpop.permute.xlu0 %800
    %v803 = vmul.f32 %v798, %v801
    %v804 = vrot.slane %v728, 2
    %805 = vrot.lane.b32.xlu0 %v804, 32
    %v806 = vpop.permute.xlu0 %805
    %v808 = vmul.f32 %v784, %v806
    %v809 = vadd.f32 %v803, %v808
    %v811 = vsel %vm131, %v738, 0
    %813 = vmatpush.msra.mxu0 0.0
    %814 = vmatpush.msra.mxu0 0.0
    %815 = vmatpush.msra.mxu0 0.0
    %816 = vmatpush.msra.mxu0 0.0
    %817 = vmatpush.msra.mxu0 0.0
    %818 = vmatpush.msra.mxu0 0.0
    %819 = vmatpush.msra.mxu0 0.0
    %820 = vmatpush.msra.mxu0 0.0
    %821 = vmatpush.msra.mxu0 0.0
    %822 = vmatpush.msra.mxu0 0.0
    %823 = vmatpush.msra.mxu0 0.0
    %824 = vmatpush.msra.mxu0 0.0
    %825 = vmatpush.msra.mxu0 %v191
    %826 = vmatpush.msra.mxu0 %v190
    %827 = vmatpush.msra.mxu0 %v189
    %828 = vmatpush.msra.mxu0 %v188
    %829 = vmatmul.f32.gmra.mxu0 %v811
    %v830 = vpop.f32.mrf.mxu0
    %v831 = vadd.f32 0.0, %v830
    %832 = vdwg.mxu0
    %834 = vrot.lane.b32.xlu0 %v831, 96
    %v835 = vpop.permute.xlu0 %834
    %v837 = vadd.f32 %v159, %v835
    %v838 = vadd.f32 %v182, %v835
    %v839 = vxor.u32 %v837, 2147483648
    %v840 = vxor.u32 %v838, 2147483648
    %v841 = vmul.f32 %v839, 1.442695
    %v842 = vpow.pop %v841
    %v843 = vmul.f32 %v840, 1.442695
    %v844 = vpow.pop %v843
    %v845 = vadd.f32 %v842, 1.0
    %v846 = vadd.f32 %v844, 1.0
    %v847 = vrcp.pop %v845
    %v848 = vmul.f32 %v845, %v847
    %v849 = vsub.f32 1.0, %v848
    %v850 = vmul.f32 %v847, %v849
    %v851 = vadd.f32 %v847, %v850
    %vm852 = vweird.f32 %v845
    %vm853 = vweird.f32 %v847
    %vm854 = vmor %vm852, %vm853
    %v855 = vsel %vm854, %v847, %v851
    %v856 = vand.u32 2147483647, %v845
    %vm857 = vcmp.eq.f32.partialorder %v856, 8.507059e+37
    %v858 = vand.u32 %v845, 2147483648
    %v859 = vor.u32 1.1754944e-38, %v858
    %v860 = vsel %vm857, %v859, %v855
    %v861 = vmul.f32 1.0, %v860
    %v862 = vrcp.pop %v846
    %v863 = vmul.f32 %v846, %v862
    %v864 = vsub.f32 1.0, %v863
    %v865 = vmul.f32 %v862, %v864
    %v866 = vadd.f32 %v862, %v865
    %vm867 = vweird.f32 %v846
    %vm868 = vweird.f32 %v862
    %vm869 = vmor %vm867, %vm868
    %v870 = vsel %vm869, %v862, %v866
    %v871 = vand.u32 2147483647, %v846
    %vm872 = vcmp.eq.f32.partialorder %v871, 8.507059e+37
    %v873 = vand.u32 %v846, 2147483648
    %v874 = vor.u32 1.1754944e-38, %v873
    %v875 = vsel %vm872, %v874, %v870
    %v876 = vmul.f32 1.0, %v875
    %v877 = vadd.f32 %v831, %v330
    %879 = vrot.lane.b32.xlu0 %v877, 32
    %v880 = vpop.permute.xlu0 %879
    %v882 = vmul.f32 %v861, %v880
    %884 = vrot.lane.b32.xlu0 %v882, 64
    %v885 = vpop.permute.xlu0 %884
    %v887 = vadd.f32 %v182, %v885
    %v888 = vtanh.pop %v887
    %v889 = vsub.f32 1.0, %v876
    %891 = vrot.lane.b32.xlu0 %v888, 96
    %v892 = vpop.permute.xlu0 %891
    %v894 = vmul.f32 %v889, %v892
    %v895 = vmul.f32 %v876, %v738
    %v896 = vadd.f32 %v894, %v895
    %vm897 = vcmp.gt.s32.totalorder %v114, 3
    %v898 = vsel %vm897, 1, 0
    %899 = vset.pattern.permute.xlu0 0
    %900 = vperm.xlu0 %899, %v898
    %v901 = vpop.permute.xlu0 %900
    %vm902 = vcmp.eq.s32.totalorder %v901, 1
    %v904 = vrot.slane %v809, 6
    %905 = vrot.lane.b32.xlu0 %v904, 96
    %v906 = vpop.permute.xlu0 %905
    %v908 = vsel %vm902, %v906, %v728
    %vm909 = vcmp.gt.s32.totalorder %v114, 4
    %v910 = vsel %vm909, 1, 0
    %911 = vset.pattern.permute.xlu0 0
    %912 = vperm.xlu0 %911, %v910
    %v913 = vpop.permute.xlu0 %912
    %vm914 = vcmp.eq.s32.totalorder %v913, 1
    %v915 = vsel %vm914, %v896, %v738
    %v917 = vsel %vm131, %v908, 0
    %919 = vmatpush.msra.mxu0 0.0
    %920 = vmatpush.msra.mxu0 0.0
    %921 = vmatpush.msra.mxu0 0.0
    %922 = vmatpush.msra.mxu0 0.0
    %923 = vmatpush.msra.mxu0 0.0
    %924 = vmatpush.msra.mxu0 0.0
    %925 = vmatpush.msra.mxu0 0.0
    %926 = vmatpush.msra.mxu0 0.0
    %927 = vmatpush.msra.mxu0 0.0
    %928 = vmatpush.msra.mxu0 0.0
    %929 = vmatpush.msra.mxu0 0.0
    %930 = vmatpush.msra.mxu0 0.0
    %931 = vmatpush.msra.mxu0 %v187
    %932 = vmatpush.msra.mxu0 %v186
    %933 = vmatpush.msra.mxu0 %v185
    %934 = vmatpush.msra.mxu0 %v184
    %935 = vmatmul.f32.gmra.mxu0 %v917
    %v936 = vpop.f32.mrf.mxu0
    %v937 = vadd.f32 0.0, %v936
    %938 = vdwg.mxu0
    %v939 = vadd.f32 %v159, %v937
    %v940 = vxor.u32 %v939, 2147483648
    %v941 = vmul.f32 %v940, 1.442695
    %v942 = vpow.pop %v941
    %v943 = vadd.f32 %v942, 1.0
    %v944 = vrcp.pop %v943
    %v945 = vmul.f32 %v943, %v944
    %v946 = vsub.f32 1.0, %v945
    %v947 = vmul.f32 %v944, %v946
    %v948 = vadd.f32 %v944, %v947
    %vm949 = vweird.f32 %v943
    %vm950 = vweird.f32 %v944
    %vm951 = vmor %vm949, %vm950
    %v952 = vsel %vm951, %v944, %v948
    %v953 = vand.u32 2147483647, %v943
    %vm954 = vcmp.eq.f32.partialorder %v953, 8.507059e+37
    %v955 = vand.u32 %v943, 2147483648
    %v956 = vor.u32 1.1754944e-38, %v955
    %v957 = vsel %vm954, %v956, %v952
    %v958 = vmul.f32 1.0, %v957
    %v959 = vadd.f32 %v937, %v242
    %961 = vrot.lane.b32.xlu0 %v959, 64
    %v962 = vpop.permute.xlu0 %961
    %v964 = vmul.f32 %v958, %v962
    %966 = vrot.lane.b32.xlu0 %v964, 64
    %v967 = vpop.permute.xlu0 %966
    %v969 = vadd.f32 %v159, %v967
    %v970 = vtanh.pop %v969
    %v971 = vsub.f32 1.0, %v958
    %973 = vrot.lane.b32.xlu0 %v970, 96
    %v974 = vpop.permute.xlu0 %973
    %v976 = vmul.f32 %v971, %v974
    %977 = vrot.lane.b32.xlu0 %v908, 32
    %v978 = vpop.permute.xlu0 %977
    %v980 = vmul.f32 %v958, %v978
    %v981 = vadd.f32 %v976, %v980
    %v983 = vsel %vm131, %v915, 0
    %985 = vmatpush.msra.mxu0 0.0
    %986 = vmatpush.msra.mxu0 0.0
    %987 = vmatpush.msra.mxu0 0.0
    %988 = vmatpush.msra.mxu0 0.0
    %989 = vmatpush.msra.mxu0 0.0
    %990 = vmatpush.msra.mxu0 0.0
    %991 = vmatpush.msra.mxu0 0.0
    %992 = vmatpush.msra.mxu0 0.0
    %993 = vmatpush.msra.mxu0 0.0
    %994 = vmatpush.msra.mxu0 0.0
    %995 = vmatpush.msra.mxu0 0.0
    %996 = vmatpush.msra.mxu0 0.0
    %997 = vmatpush.msra.mxu0 %v191
    %998 = vmatpush.msra.mxu0 %v190
    %999 = vmatpush.msra.mxu0 %v189
    %1000 = vmatpush.msra.mxu0 %v188
    %1001 = vmatmul.f32.gmra.mxu0 %v983
    %v1002 = vpop.f32.mrf.mxu0
    %v1003 = vadd.f32 0.0, %v1002
    %1004 = vdwg.mxu0
    %v1006 = vrot.slane %v1003, 2
    %1007 = vrot.lane.b32.xlu0 %v1006, 96
    %v1008 = vpop.permute.xlu0 %1007
    %v1010 = vadd.f32 %v156, %v1008
    %v1011 = vadd.f32 %v179, %v1008
    %v1012 = vxor.u32 %v1010, 2147483648
    %v1013 = vxor.u32 %v1011, 2147483648
    %v1014 = vmul.f32 %v1012, 1.442695
    %v1015 = vpow.pop %v1014
    %v1016 = vmul.f32 %v1013, 1.442695
    %v1017 = vpow.pop %v1016
    %v1018 = vadd.f32 %v1015, 1.0
    %v1019 = vadd.f32 %v1017, 1.0
    %v1020 = vrcp.pop %v1018
    %v1021 = vmul.f32 %v1018, %v1020
    %v1022 = vsub.f32 1.0, %v1021
    %v1023 = vmul.f32 %v1020, %v1022
    %v1024 = vadd.f32 %v1020, %v1023
    %vm1025 = vweird.f32 %v1018
    %vm1026 = vweird.f32 %v1020
    %vm1027 = vmor %vm1025, %vm1026
    %v1028 = vsel %vm1027, %v1020, %v1024
    %v1029 = vand.u32 2147483647, %v1018
    %vm1030 = vcmp.eq.f32.partialorder %v1029, 8.507059e+37
    %v1031 = vand.u32 %v1018, 2147483648
    %v1032 = vor.u32 1.1754944e-38, %v1031
    %v1033 = vsel %vm1030, %v1032, %v1028
    %v1034 = vmul.f32 1.0, %v1033
    %v1035 = vrcp.pop %v1019
    %v1036 = vmul.f32 %v1019, %v1035
    %v1037 = vsub.f32 1.0, %v1036
    %v1038 = vmul.f32 %v1035, %v1037
    %v1039 = vadd.f32 %v1035, %v1038
    %vm1040 = vweird.f32 %v1019
    %vm1041 = vweird.f32 %v1035
    %vm1042 = vmor %vm1040, %vm1041
    %v1043 = vsel %vm1042, %v1035, %v1039
    %v1044 = vand.u32 2147483647, %v1019
    %vm1045 = vcmp.eq.f32.partialorder %v1044, 8.507059e+37
    %v1046 = vand.u32 %v1019, 2147483648
    %v1047 = vor.u32 1.1754944e-38, %v1046
    %v1048 = vsel %vm1045, %v1047, %v1043
    %v1049 = vmul.f32 1.0, %v1048
    %v1050 = vadd.f32 %v1003, %v330
    %v1052 = vrot.slane %v1050, 2
    %1053 = vrot.lane.b32.xlu0 %v1052, 32
    %v1054 = vpop.permute.xlu0 %1053
    %v1056 = vmul.f32 %v1034, %v1054
    %1058 = vrot.lane.b32.xlu0 %v1056, 64
    %v1059 = vpop.permute.xlu0 %1058
    %v1061 = vadd.f32 %v179, %v1059
    %v1062 = vtanh.pop %v1061
    %v1063 = vsub.f32 1.0, %v1049
    %1065 = vrot.lane.b32.xlu0 %v1062, 96
    %v1066 = vpop.permute.xlu0 %1065
    %v1068 = vmul.f32 %v1063, %v1066
    %v1069 = vrot.slane %v915, 2
    %v1071 = vmul.f32 %v1049, %v1069
    %v1072 = vadd.f32 %v1068, %v1071
    %v1073 = vsel %vm914, %v981, %v978
    %v1075 = vrot.slane %v1072, 6
    %v1077 = vsel %vm902, %v1075, %v915
    %1079 = vrot.lane.b32.xlu0 %v1073, 96
    %v1080 = vpop.permute.xlu0 %1079
    %v1081 = vsel %vm131, %v1080, 0
    %1083 = vmatpush.msra.mxu0 0.0
    %1084 = vmatpush.msra.mxu0 0.0
    %1085 = vmatpush.msra.mxu0 0.0
    %1086 = vmatpush.msra.mxu0 0.0
    %1087 = vmatpush.msra.mxu0 0.0
    %1088 = vmatpush.msra.mxu0 0.0
    %1089 = vmatpush.msra.mxu0 0.0
    %1090 = vmatpush.msra.mxu0 0.0
    %1091 = vmatpush.msra.mxu0 0.0
    %1092 = vmatpush.msra.mxu0 0.0
    %1093 = vmatpush.msra.mxu0 0.0
    %1094 = vmatpush.msra.mxu0 0.0
    %1095 = vmatpush.msra.mxu0 %v187
    %1096 = vmatpush.msra.mxu0 %v186
    %1097 = vmatpush.msra.mxu0 %v185
    %1098 = vmatpush.msra.mxu0 %v184
    %1099 = vmatmul.f32.gmra.mxu0 %v1081
    %v1100 = vpop.f32.mrf.mxu0
    %v1101 = vadd.f32 0.0, %v1100
    %1102 = vdwg.mxu0
    %v1104 = vrot.slane %v1101, 6
    %v1106 = vadd.f32 %v159, %v1104
    %v1107 = vxor.u32 %v1106, 2147483648
    %v1108 = vmul.f32 %v1107, 1.442695
    %v1109 = vpow.pop %v1108
    %v1110 = vadd.f32 %v1109, 1.0
    %v1111 = vrcp.pop %v1110
    %v1112 = vmul.f32 %v1110, %v1111
    %v1113 = vsub.f32 1.0, %v1112
    %v1114 = vmul.f32 %v1111, %v1113
    %v1115 = vadd.f32 %v1111, %v1114
    %vm1116 = vweird.f32 %v1110
    %vm1117 = vweird.f32 %v1111
    %vm1118 = vmor %vm1116, %vm1117
    %v1119 = vsel %vm1118, %v1111, %v1115
    %v1120 = vand.u32 2147483647, %v1110
    %vm1121 = vcmp.eq.f32.partialorder %v1120, 8.507059e+37
    %v1122 = vand.u32 %v1110, 2147483648
    %v1123 = vor.u32 1.1754944e-38, %v1122
    %v1124 = vsel %vm1121, %v1123, %v1119
    %v1125 = vmul.f32 1.0, %v1124
    %v1126 = vadd.f32 %v1101, %v242
    %v1128 = vrot.slane %v1126, 6
    %1129 = vrot.lane.b32.xlu0 %v1128, 64
    %v1130 = vpop.permute.xlu0 %1129
    %v1132 = vmul.f32 %v1125, %v1130
    %1134 = vrot.lane.b32.xlu0 %v1132, 64
    %v1135 = vpop.permute.xlu0 %1134
    %v1137 = vadd.f32 %v159, %v1135
    %v1138 = vtanh.pop %v1137
    %v1139 = vsub.f32 1.0, %v1125
    %1141 = vrot.lane.b32.xlu0 %v1138, 96
    %v1142 = vpop.permute.xlu0 %1141
    %v1144 = vmul.f32 %v1139, %v1142
    %v1145 = vrot.slane %v1073, 6
    %v1147 = vmul.f32 %v1125, %v1145
    %v1148 = vadd.f32 %v1144, %v1147
    %v1150 = vsel %vm131, %v1077, 0
    %1152 = vmatpush.msra.mxu0 0.0
    %1153 = vmatpush.msra.mxu0 0.0
    %1154 = vmatpush.msra.mxu0 0.0
    %1155 = vmatpush.msra.mxu0 0.0
    %1156 = vmatpush.msra.mxu0 0.0
    %1157 = vmatpush.msra.mxu0 0.0
    %1158 = vmatpush.msra.mxu0 0.0
    %1159 = vmatpush.msra.mxu0 0.0
    %1160 = vmatpush.msra.mxu0 0.0
    %1161 = vmatpush.msra.mxu0 0.0
    %1162 = vmatpush.msra.mxu0 0.0
    %1163 = vmatpush.msra.mxu0 0.0
    %1164 = vmatpush.msra.mxu0 %v191
    %1165 = vmatpush.msra.mxu0 %v190
    %1166 = vmatpush.msra.mxu0 %v189
    %1167 = vmatpush.msra.mxu0 %v188
    %1168 = vmatmul.f32.gmra.mxu0 %v1150
    %v1169 = vpop.f32.mrf.mxu0
    %v1170 = vadd.f32 0.0, %v1169
    %1171 = vdwg.mxu0
    %v1173 = vrot.slane %v1170, 4
    %1174 = vrot.lane.b32.xlu0 %v1173, 96
    %v1175 = vpop.permute.xlu0 %1174
    %v1177 = vadd.f32 %v156, %v1175
    %v1178 = vadd.f32 %v179, %v1175
    %v1179 = vxor.u32 %v1177, 2147483648
    %v1180 = vxor.u32 %v1178, 2147483648
    %v1181 = vmul.f32 %v1179, 1.442695
    %v1182 = vpow.pop %v1181
    %v1183 = vmul.f32 %v1180, 1.442695
    %v1184 = vpow.pop %v1183
    %v1185 = vadd.f32 %v1182, 1.0
    %v1186 = vadd.f32 %v1184, 1.0
    %v1187 = vrcp.pop %v1185
    %v1188 = vmul.f32 %v1185, %v1187
    %v1189 = vsub.f32 1.0, %v1188
    %v1190 = vmul.f32 %v1187, %v1189
    %v1191 = vadd.f32 %v1187, %v1190
    %vm1192 = vweird.f32 %v1185
    %vm1193 = vweird.f32 %v1187
    %vm1194 = vmor %vm1192, %vm1193
    %v1195 = vsel %vm1194, %v1187, %v1191
    %v1196 = vand.u32 2147483647, %v1185
    %vm1197 = vcmp.eq.f32.partialorder %v1196, 8.507059e+37
    %v1198 = vand.u32 %v1185, 2147483648
    %v1199 = vor.u32 1.1754944e-38, %v1198
    %v1200 = vsel %vm1197, %v1199, %v1195
    %v1201 = vmul.f32 1.0, %v1200
    %v1202 = vrcp.pop %v1186
    %v1203 = vmul.f32 %v1186, %v1202
    %v1204 = vsub.f32 1.0, %v1203
    %v1205 = vmul.f32 %v1202, %v1204
    %v1206 = vadd.f32 %v1202, %v1205
    %vm1207 = vweird.f32 %v1186
    %vm1208 = vweird.f32 %v1202
    %vm1209 = vmor %vm1207, %vm1208
    %v1210 = vsel %vm1209, %v1202, %v1206
    %v1211 = vand.u32 2147483647, %v1186
    %vm1212 = vcmp.eq.f32.partialorder %v1211, 8.507059e+37
    %v1213 = vand.u32 %v1186, 2147483648
    %v1214 = vor.u32 1.1754944e-38, %v1213
    %v1215 = vsel %vm1212, %v1214, %v1210
    %v1216 = vmul.f32 1.0, %v1215
    %v1217 = vadd.f32 %v1170, %v330
    %v1219 = vrot.slane %v1217, 4
    %1220 = vrot.lane.b32.xlu0 %v1219, 32
    %v1221 = vpop.permute.xlu0 %1220
    %v1223 = vmul.f32 %v1201, %v1221
    %1225 = vrot.lane.b32.xlu0 %v1223, 64
    %v1226 = vpop.permute.xlu0 %1225
    %v1228 = vadd.f32 %v179, %v1226
    %v1229 = vtanh.pop %v1228
    %v1230 = vsub.f32 1.0, %v1216
    %1232 = vrot.lane.b32.xlu0 %v1229, 96
    %v1233 = vpop.permute.xlu0 %1232
    %v1235 = vmul.f32 %v1230, %v1233
    %v1236 = vrot.slane %v1077, 4
    %v1238 = vmul.f32 %v1216, %v1236
    %v1239 = vadd.f32 %v1235, %v1238
    %v1241 = vrot.slane %v1148, 2
    %1242 = vrot.lane.b32.xlu0 %v1241, 96
    %v1243 = vpop.permute.xlu0 %1242
    %v1246 = vsel %vm734, %v1243, %v1080
    %v1248 = vrot.slane %v1239, 4
    %v1250 = vsel %vm722, %v1248, %v1077
    %v1252 = vsel %vm131, %v1246, 0
    %1254 = vmatpush.msra.mxu0 0.0
    %1255 = vmatpush.msra.mxu0 0.0
    %1256 = vmatpush.msra.mxu0 0.0
    %1257 = vmatpush.msra.mxu0 0.0
    %1258 = vmatpush.msra.mxu0 0.0
    %1259 = vmatpush.msra.mxu0 0.0
    %1260 = vmatpush.msra.mxu0 0.0
    %1261 = vmatpush.msra.mxu0 0.0
    %1262 = vmatpush.msra.mxu0 0.0
    %1263 = vmatpush.msra.mxu0 0.0
    %1264 = vmatpush.msra.mxu0 0.0
    %1265 = vmatpush.msra.mxu0 0.0
    %1266 = vmatpush.msra.mxu0 %v187
    %1267 = vmatpush.msra.mxu0 %v186
    %1268 = vmatpush.msra.mxu0 %v185
    %1269 = vmatpush.msra.mxu0 %v184
    %1270 = vmatmul.f32.gmra.mxu0 %v1252
    %v1271 = vpop.f32.mrf.mxu0
    %v1272 = vadd.f32 0.0, %v1271
    %1273 = vdwg.mxu0
    %v1275 = vrot.slane %v1272, 4
    %v1277 = vadd.f32 %v159, %v1275
    %v1278 = vxor.u32 %v1277, 2147483648
    %v1279 = vmul.f32 %v1278, 1.442695
    %v1280 = vpow.pop %v1279
    %v1281 = vadd.f32 %v1280, 1.0
    %v1282 = vrcp.pop %v1281
    %v1283 = vmul.f32 %v1281, %v1282
    %v1284 = vsub.f32 1.0, %v1283
    %v1285 = vmul.f32 %v1282, %v1284
    %v1286 = vadd.f32 %v1282, %v1285
    %vm1287 = vweird.f32 %v1281
    %vm1288 = vweird.f32 %v1282
    %vm1289 = vmor %vm1287, %vm1288
    %v1290 = vsel %vm1289, %v1282, %v1286
    %v1291 = vand.u32 2147483647, %v1281
    %vm1292 = vcmp.eq.f32.partialorder %v1291, 8.507059e+37
    %v1293 = vand.u32 %v1281, 2147483648
    %v1294 = vor.u32 1.1754944e-38, %v1293
    %v1295 = vsel %vm1292, %v1294, %v1290
    %v1296 = vmul.f32 1.0, %v1295
    %v1297 = vadd.f32 %v1272, %v242
    %v1299 = vrot.slane %v1297, 4
    %1300 = vrot.lane.b32.xlu0 %v1299, 64
    %v1301 = vpop.permute.xlu0 %1300
    %v1303 = vmul.f32 %v1296, %v1301
    %1305 = vrot.lane.b32.xlu0 %v1303, 64
    %v1306 = vpop.permute.xlu0 %1305
    %v1308 = vadd.f32 %v159, %v1306
    %v1309 = vtanh.pop %v1308
    %v1310 = vsub.f32 1.0, %v1296
    %1312 = vrot.lane.b32.xlu0 %v1309, 96
    %v1313 = vpop.permute.xlu0 %1312
    %v1315 = vmul.f32 %v1310, %v1313
    %v1316 = vrot.slane %v1246, 4
    %1317 = vrot.lane.b32.xlu0 %v1316, 32
    %v1318 = vpop.permute.xlu0 %1317
    %v1320 = vmul.f32 %v1296, %v1318
    %v1321 = vadd.f32 %v1315, %v1320
    %v1323 = vsel %vm131, %v1250, 0
    %1325 = vmatpush.msra.mxu0 0.0
    %1326 = vmatpush.msra.mxu0 0.0
    %1327 = vmatpush.msra.mxu0 0.0
    %1328 = vmatpush.msra.mxu0 0.0
    %1329 = vmatpush.msra.mxu0 0.0
    %1330 = vmatpush.msra.mxu0 0.0
    %1331 = vmatpush.msra.mxu0 0.0
    %1332 = vmatpush.msra.mxu0 0.0
    %1333 = vmatpush.msra.mxu0 0.0
    %1334 = vmatpush.msra.mxu0 0.0
    %1335 = vmatpush.msra.mxu0 0.0
    %1336 = vmatpush.msra.mxu0 0.0
    %1337 = vmatpush.msra.mxu0 %v191
    %1338 = vmatpush.msra.mxu0 %v190
    %1339 = vmatpush.msra.mxu0 %v189
    %1340 = vmatpush.msra.mxu0 %v188
    %1341 = vmatmul.f32.gmra.mxu0 %v1323
    %v1342 = vpop.f32.mrf.mxu0
    %v1343 = vadd.f32 0.0, %v1342
    %1344 = vdwg.mxu0
    %v1346 = vrot.slane %v1343, 6
    %1347 = vrot.lane.b32.xlu0 %v1346, 96
    %v1348 = vpop.permute.xlu0 %1347
    %v1350 = vadd.f32 %v156, %v1348
    %v1351 = vadd.f32 %v179, %v1348
    %v1352 = vxor.u32 %v1350, 2147483648
    %v1353 = vxor.u32 %v1351, 2147483648
    %v1354 = vmul.f32 %v1352, 1.442695
    %v1355 = vpow.pop %v1354
    %v1356 = vmul.f32 %v1353, 1.442695
    %v1357 = vpow.pop %v1356
    %v1358 = vadd.f32 %v1355, 1.0
    %v1359 = vadd.f32 %v1357, 1.0
    %v1360 = vrcp.pop %v1358
    %v1361 = vmul.f32 %v1358, %v1360
    %v1362 = vsub.f32 1.0, %v1361
    %v1363 = vmul.f32 %v1360, %v1362
    %v1364 = vadd.f32 %v1360, %v1363
    %vm1365 = vweird.f32 %v1358
    %vm1366 = vweird.f32 %v1360
    %vm1367 = vmor %vm1365, %vm1366
    %v1368 = vsel %vm1367, %v1360, %v1364
    %v1369 = vand.u32 2147483647, %v1358
    %vm1370 = vcmp.eq.f32.partialorder %v1369, 8.507059e+37
    %v1371 = vand.u32 %v1358, 2147483648
    %v1372 = vor.u32 1.1754944e-38, %v1371
    %v1373 = vsel %vm1370, %v1372, %v1368
    %v1374 = vmul.f32 1.0, %v1373
    %v1375 = vrcp.pop %v1359
    %v1376 = vmul.f32 %v1359, %v1375
    %v1377 = vsub.f32 1.0, %v1376
    %v1378 = vmul.f32 %v1375, %v1377
    %v1379 = vadd.f32 %v1375, %v1378
    %vm1380 = vweird.f32 %v1359
    %vm1381 = vweird.f32 %v1375
    %vm1382 = vmor %vm1380, %vm1381
    %v1383 = vsel %vm1382, %v1375, %v1379
    %v1384 = vand.u32 2147483647, %v1359
    %vm1385 = vcmp.eq.f32.partialorder %v1384, 8.507059e+37
    %v1386 = vand.u32 %v1359, 2147483648
    %v1387 = vor.u32 1.1754944e-38, %v1386
    %v1388 = vsel %vm1385, %v1387, %v1383
    %v1389 = vmul.f32 1.0, %v1388
    %v1390 = vadd.f32 %v1343, %v330
    %v1392 = vrot.slane %v1390, 6
    %1393 = vrot.lane.b32.xlu0 %v1392, 32
    %v1394 = vpop.permute.xlu0 %1393
    %v1396 = vmul.f32 %v1374, %v1394
    %1398 = vrot.lane.b32.xlu0 %v1396, 64
    %v1399 = vpop.permute.xlu0 %1398
    %v1401 = vadd.f32 %v179, %v1399
    %v1402 = vtanh.pop %v1401
    %v1403 = vsub.f32 1.0, %v1389
    %1405 = vrot.lane.b32.xlu0 %v1402, 96
    %v1406 = vpop.permute.xlu0 %1405
    %v1408 = vmul.f32 %v1403, %v1406
    %v1409 = vrot.slane %v1250, 6
    %v1411 = vmul.f32 %v1389, %v1409
    %v1412 = vadd.f32 %v1408, %v1411
    %v1414 = vrot.slane %v1321, 4
    %1415 = vrot.lane.b32.xlu0 %v1414, 96
    %v1416 = vpop.permute.xlu0 %1415
    %v1418 = vsel %vm550, %v1416, %v1246
    %v1420 = vrot.slane %v1412, 2
    %v1422 = vsel %vm537, %v1420, %v1250
    %v1424 = vsel %vm131, %v1418, 0
    %1426 = vmatpush.msra.mxu0 0.0
    %1427 = vmatpush.msra.mxu0 0.0
    %1428 = vmatpush.msra.mxu0 0.0
    %1429 = vmatpush.msra.mxu0 0.0
    %1430 = vmatpush.msra.mxu0 0.0
    %1431 = vmatpush.msra.mxu0 0.0
    %1432 = vmatpush.msra.mxu0 0.0
    %1433 = vmatpush.msra.mxu0 0.0
    %1434 = vmatpush.msra.mxu0 0.0
    %1435 = vmatpush.msra.mxu0 0.0
    %1436 = vmatpush.msra.mxu0 0.0
    %1437 = vmatpush.msra.mxu0 0.0
    %1438 = vmatpush.msra.mxu0 %v187
    %1439 = vmatpush.msra.mxu0 %v186
    %1440 = vmatpush.msra.mxu0 %v185
    %1441 = vmatpush.msra.mxu0 %v184
    %1442 = vmatmul.f32.gmra.mxu0 %v1424
    %v1443 = vpop.f32.mrf.mxu0
    %v1444 = vadd.f32 0.0, %v1443
    %1445 = vdwg.mxu0
    %v1447 = vrot.slane %v1444, 2
    %v1449 = vadd.f32 %v159, %v1447
    %v1450 = vxor.u32 %v1449, 2147483648
    %v1451 = vmul.f32 %v1450, 1.442695
    %v1452 = vpow.pop %v1451
    %v1453 = vadd.f32 %v1452, 1.0
    %v1454 = vrcp.pop %v1453
    %v1455 = vmul.f32 %v1453, %v1454
    %v1456 = vsub.f32 1.0, %v1455
    %v1457 = vmul.f32 %v1454, %v1456
    %v1458 = vadd.f32 %v1454, %v1457
    %vm1459 = vweird.f32 %v1453
    %vm1460 = vweird.f32 %v1454
    %vm1461 = vmor %vm1459, %vm1460
    %v1462 = vsel %vm1461, %v1454, %v1458
    %v1463 = vand.u32 2147483647, %v1453
    %vm1464 = vcmp.eq.f32.partialorder %v1463, 8.507059e+37
    %v1465 = vand.u32 %v1453, 2147483648
    %v1466 = vor.u32 1.1754944e-38, %v1465
    %v1467 = vsel %vm1464, %v1466, %v1462
    %v1468 = vmul.f32 1.0, %v1467
    %v1469 = vadd.f32 %v1444, %v242
    %v1471 = vrot.slane %v1469, 2
    %1472 = vrot.lane.b32.xlu0 %v1471, 64
    %v1473 = vpop.permute.xlu0 %1472
    %v1475 = vmul.f32 %v1468, %v1473
    %1477 = vrot.lane.b32.xlu0 %v1475, 64
    %v1478 = vpop.permute.xlu0 %1477
    %v1480 = vadd.f32 %v159, %v1478
    %v1481 = vtanh.pop %v1480
    %v1482 = vsub.f32 1.0, %v1468
    %1484 = vrot.lane.b32.xlu0 %v1481, 96
    %v1485 = vpop.permute.xlu0 %1484
    %v1487 = vmul.f32 %v1482, %v1485
    %v1488 = vrot.slane %v1418, 2
    %1489 = vrot.lane.b32.xlu0 %v1488, 32
    %v1490 = vpop.permute.xlu0 %1489
    %v1492 = vmul.f32 %v1468, %v1490
    %v1493 = vadd.f32 %v1487, %v1492
    %v1495 = vsel %vm131, %v1422, 0
    %1497 = vmatpush.msra.mxu0 0.0
    %1498 = vmatpush.msra.mxu0 0.0
    %1499 = vmatpush.msra.mxu0 0.0
    %1500 = vmatpush.msra.mxu0 0.0
    %1501 = vmatpush.msra.mxu0 0.0
    %1502 = vmatpush.msra.mxu0 0.0
    %1503 = vmatpush.msra.mxu0 0.0
    %1504 = vmatpush.msra.mxu0 0.0
    %1505 = vmatpush.msra.mxu0 0.0
    %1506 = vmatpush.msra.mxu0 0.0
    %1507 = vmatpush.msra.mxu0 0.0
    %1508 = vmatpush.msra.mxu0 0.0
    %1509 = vmatpush.msra.mxu0 %v191
    %1510 = vmatpush.msra.mxu0 %v190
    %1511 = vmatpush.msra.mxu0 %v189
    %1512 = vmatpush.msra.mxu0 %v188
    %1513 = vmatmul.f32.gmra.mxu0 %v1495
    %v1514 = vpop.f32.mrf.mxu0
    %v1515 = vadd.f32 0.0, %v1514
    %1516 = vdwg.mxu0
    %1518 = vrot.lane.b32.xlu0 %v1515, 96
    %v1519 = vpop.permute.xlu0 %1518
    %v1521 = vadd.f32 %v156, %v1519
    %v1522 = vadd.f32 %v179, %v1519
    %v1523 = vxor.u32 %v1521, 2147483648
    %v1524 = vxor.u32 %v1522, 2147483648
    %v1525 = vmul.f32 %v1523, 1.442695
    %v1526 = vpow.pop %v1525
    %v1527 = vmul.f32 %v1524, 1.442695
    %v1528 = vpow.pop %v1527
    %v1529 = vadd.f32 %v1526, 1.0
    %v1530 = vadd.f32 %v1528, 1.0
    %v1531 = vrcp.pop %v1529
    %v1532 = vmul.f32 %v1529, %v1531
    %v1533 = vsub.f32 1.0, %v1532
    %v1534 = vmul.f32 %v1531, %v1533
    %v1535 = vadd.f32 %v1531, %v1534
    %vm1536 = vweird.f32 %v1529
    %vm1537 = vweird.f32 %v1531
    %vm1538 = vmor %vm1536, %vm1537
    %v1539 = vsel %vm1538, %v1531, %v1535
    %v1540 = vand.u32 2147483647, %v1529
    %vm1541 = vcmp.eq.f32.partialorder %v1540, 8.507059e+37
    %v1542 = vand.u32 %v1529, 2147483648
    %v1543 = vor.u32 1.1754944e-38, %v1542
    %v1544 = vsel %vm1541, %v1543, %v1539
    %v1545 = vmul.f32 1.0, %v1544
    %v1546 = vrcp.pop %v1530
    %v1547 = vmul.f32 %v1530, %v1546
    %v1548 = vsub.f32 1.0, %v1547
    %v1549 = vmul.f32 %v1546, %v1548
    %v1550 = vadd.f32 %v1546, %v1549
    %vm1551 = vweird.f32 %v1530
    %vm1552 = vweird.f32 %v1546
    %vm1553 = vmor %vm1551, %vm1552
    %v1554 = vsel %vm1553, %v1546, %v1550
    %v1555 = vand.u32 2147483647, %v1530
    %vm1556 = vcmp.eq.f32.partialorder %v1555, 8.507059e+37
    %v1557 = vand.u32 %v1530, 2147483648
    %v1558 = vor.u32 1.1754944e-38, %v1557
    %v1559 = vsel %vm1556, %v1558, %v1554
    %v1560 = vmul.f32 1.0, %v1559
    %v1561 = vadd.f32 %v1515, %v330
    %1563 = vrot.lane.b32.xlu0 %v1561, 32
    %v1564 = vpop.permute.xlu0 %1563
    %v1566 = vmul.f32 %v1545, %v1564
    %1568 = vrot.lane.b32.xlu0 %v1566, 64
    %v1569 = vpop.permute.xlu0 %1568
    %v1571 = vadd.f32 %v179, %v1569
    %v1572 = vtanh.pop %v1571
    %v1573 = vsub.f32 1.0, %v1560
    %1575 = vrot.lane.b32.xlu0 %v1572, 96
    %v1576 = vpop.permute.xlu0 %1575
    %v1578 = vmul.f32 %v1573, %v1576
    %v1579 = vmul.f32 %v1560, %v1422
    %v1580 = vadd.f32 %v1578, %v1579
    %v1582 = vrot.slane %v1493, 6
    %1583 = vrot.lane.b32.xlu0 %v1582, 96
    %v1584 = vpop.permute.xlu0 %1583
    %v1586 = vsel %vm365, %v1584, %v1418
    %v1587 = vsel %vm358, %v1580, %v1422
    %v1588 = vadd.f32 %v1586, %v1587
    %v1589 = vld [vmem:[#allocation10] sm:$0xff]
    %v1590 = vld [vmem:[#allocation10 + $0x8] sm:$0xff]
    %v1591 = vld [vmem:[#allocation10 + $0x10] sm:$0xff]
    %v1592 = vld [vmem:[#allocation10 + $0x18] sm:$0xff]
    %v1593 = vld [vmem:[#allocation10 + $0x20] sm:$0xff]
    %v1594 = vld [vmem:[#allocation10 + $0x28] sm:$0xff]
    %v1595 = vld [vmem:[#allocation10 + $0x30] sm:$0xff]
    %v1596 = vld [vmem:[#allocation10 + $0x38] sm:$0xff]
    %v1597 = vld [vmem:[#allocation10 + $0x40] sm:$0xff]
    %v1598 = vld [vmem:[#allocation10 + $0x48] sm:$0xff]
    %v1599 = vld [vmem:[#allocation10 + $0x50] sm:$0xff]
    %v1600 = vld [vmem:[#allocation10 + $0x58] sm:$0xff]
    %v1601 = vld [vmem:[#allocation10 + $0x60] sm:$0xff]
    %v1602 = vld [vmem:[#allocation10 + $0x68] sm:$0xff]
    %v1603 = vld [vmem:[#allocation10 + $0x70] sm:$0xff]
    %v1604 = vld [vmem:[#allocation10 + $0x78] sm:$0xff]
    %v1605 = vld [vmem:[%s9] sm:$0xf]
    %v1607 = vperm.slane %v1605, 0
    %v1608 = vperm.slane %v1605, 1
    %v1609 = vperm.slane %v1605, 2
    %v1610 = vperm.slane %v1605, 3
    %v1616 = vsel %vm131, %v1588, 0
    %1618 = vmatpush.msra.mxu0 0.0
    %1619 = vmatpush.msra.mxu0 0.0
    %1620 = vmatpush.msra.mxu0 0.0
    %1621 = vmatpush.msra.mxu0 0.0
    %1622 = vmatpush.msra.mxu0 0.0
    %1623 = vmatpush.msra.mxu0 0.0
    %1624 = vmatpush.msra.mxu0 0.0
    %1625 = vmatpush.msra.mxu0 0.0
    %1626 = vmatpush.msra.mxu0 0.0
    %1627 = vmatpush.msra.mxu0 0.0
    %1628 = vmatpush.msra.mxu0 0.0
    %1629 = vmatpush.msra.mxu0 0.0
    %1630 = vmatpush.msra.mxu0 %v1601
    %1631 = vmatpush.msra.mxu0 %v1597
    %1632 = vmatpush.msra.mxu0 %v1593
    %1633 = vmatpush.msra.mxu0 %v1589
    %1634 = vmatmul.f32.gmra.mxu0 %v1616
    %v1635 = vpop.f32.mrf.mxu0
    %v1636 = vadd.f32 %v1607, %v1635
    %1637 = vdwg.mxu0
    %1638 = vmatpush.msra.mxu0 0.0
    %1639 = vmatpush.msra.mxu0 0.0
    %1640 = vmatpush.msra.mxu0 0.0
    %1641 = vmatpush.msra.mxu0 0.0
    %1642 = vmatpush.msra.mxu0 0.0
    %1643 = vmatpush.msra.mxu0 0.0
    %1644 = vmatpush.msra.mxu0 0.0
    %1645 = vmatpush.msra.mxu0 0.0
    %1646 = vmatpush.msra.mxu0 0.0
    %1647 = vmatpush.msra.mxu0 0.0
    %1648 = vmatpush.msra.mxu0 0.0
    %1649 = vmatpush.msra.mxu0 0.0
    %1650 = vmatpush.msra.mxu0 %v1602
    %1651 = vmatpush.msra.mxu0 %v1598
    %1652 = vmatpush.msra.mxu0 %v1594
    %1653 = vmatpush.msra.mxu0 %v1590
    %1654 = vmatmul.f32.gmra.mxu0 %v1616
    %v1655 = vpop.f32.mrf.mxu0
    %v1656 = vadd.f32 %v1608, %v1655
    %1657 = vdwg.mxu0
    %1658 = vmatpush.msra.mxu0 0.0
    %1659 = vmatpush.msra.mxu0 0.0
    %1660 = vmatpush.msra.mxu0 0.0
    %1661 = vmatpush.msra.mxu0 0.0
    %1662 = vmatpush.msra.mxu0 0.0
    %1663 = vmatpush.msra.mxu0 0.0
    %1664 = vmatpush.msra.mxu0 0.0
    %1665 = vmatpush.msra.mxu0 0.0
    %1666 = vmatpush.msra.mxu0 0.0
    %1667 = vmatpush.msra.mxu0 0.0
    %1668 = vmatpush.msra.mxu0 0.0
    %1669 = vmatpush.msra.mxu0 0.0
    %1670 = vmatpush.msra.mxu0 %v1603
    %1671 = vmatpush.msra.mxu0 %v1599
    %1672 = vmatpush.msra.mxu0 %v1595
    %1673 = vmatpush.msra.mxu0 %v1591
    %1674 = vmatmul.f32.gmra.mxu0 %v1616
    %v1675 = vpop.f32.mrf.mxu0
    %v1676 = vadd.f32 %v1609, %v1675
    %1677 = vdwg.mxu0
    %1678 = vmatpush.msra.mxu0 0.0
    %1679 = vmatpush.msra.mxu0 0.0
    %1680 = vmatpush.msra.mxu0 0.0
    %1681 = vmatpush.msra.mxu0 0.0
    %1682 = vmatpush.msra.mxu0 0.0
    %1683 = vmatpush.msra.mxu0 0.0
    %1684 = vmatpush.msra.mxu0 0.0
    %1685 = vmatpush.msra.mxu0 0.0
    %1686 = vmatpush.msra.mxu0 0.0
    %1687 = vmatpush.msra.mxu0 0.0
    %1688 = vmatpush.msra.mxu0 0.0
    %1689 = vmatpush.msra.mxu0 0.0
    %1690 = vmatpush.msra.mxu0 %v1604
    %1691 = vmatpush.msra.mxu0 %v1600
    %1692 = vmatpush.msra.mxu0 %v1596
    %1693 = vmatpush.msra.mxu0 %v1592
    %1694 = vmatmul.f32.gmra.mxu0 %v1616
    %v1695 = vpop.f32.mrf.mxu0
    %v1696 = vadd.f32 %v1610, %v1695
    %1697 = vdwg.mxu0
    %vm1698 = vcmask 1041408
    %v1699 = vsel %vm1698, %v1636, -inf
    %v1700 = vsel %vm1698, %v1656, -inf
    %v1701 = vsel %vm1698, %v1676, -inf
    %v1702 = vsel %vm1698, %v1696, -inf
    %v1703 = vmax.f32 %v1699, %v1700
    %v1704 = vmax.f32 %v1701, %v1702
    %v1705 = vmax.f32 %v1703, %v1704
    %1706 = vmax.xlane.f32.xlu0 %v1705
    %v1707 = vpop.xlane.xlu0 %1706
    %v1708 = vsub.f32 %v1636, %v1707
    %v1709 = vsub.f32 %v1656, %v1707
    %v1710 = vsub.f32 %v1676, %v1707
    %v1711 = vsub.f32 %v1696, %v1707
    %v1712 = vmul.f32 %v1708, 1.442695
    %v1713 = vpow.pop %v1712
    %v1714 = vmul.f32 %v1709, 1.442695
    %v1715 = vpow.pop %v1714
    %v1716 = vmul.f32 %v1710, 1.442695
    %v1717 = vpow.pop %v1716
    %v1718 = vmul.f32 %v1711, 1.442695
    %v1719 = vpow.pop %v1718
    %v1720 = vsel %vm1698, %v1713, 0.0
    %v1721 = vsel %vm1698, %v1715, 0.0
    %v1722 = vadd.f32 %v1720, %v1721
    %v1723 = vsel %vm1698, %v1717, 0.0
    %v1724 = vadd.f32 %v1722, %v1723
    %v1725 = vsel %vm1698, %v1719, 0.0
    %v1726 = vadd.f32 %v1724, %v1725
    %1727 = vadd.xlane.f32.xlu0 %v1726
    %v1728 = vpop.xlane.xlu0 %1727
    %v1729 = vlog2.pop %v1728
    %v1730 = vmul.f32 %v1729, 0.6931472
    %v1731 = vadd.f32 %v1707, %v1730
    %v1732 = vsub.f32 %v1636, %v1731
    %v1733 = vsub.f32 %v1656, %v1731
    %v1734 = vsub.f32 %v1676, %v1731
    %v1735 = vsub.f32 %v1696, %v1731
    %v1740 = vrot.slane %v1733, 6
    %v1741 = vrot.slane %v1734, 4
    %v1742 = vrot.slane %v1735, 2
    %v1743 = vsel %vm1698, %v1732, %v1740
    %vm1744 = vcmask 1045508
    %v1745 = vsel %vm1744, %v1741, %v1742
    %vm1746 = vcmask 1043456
    %v1747 = vsel %vm1746, %v1743, %v1745
    %1749 = vst [vmem:[#allocation11] sm:$0xff] %v1747
    // Predicated region
    $region62: #{tpu_custom_call.1} parent=1 // pred_check
      _
    $region63: #{tpu_custom_call.1} parent=1 // pred_check_branch
      %1751 = sbr.rel (0) target = $region65
    $region64: #{tpu_custom_call.1} parent=1 // pred_region
      %1753 = vsyncadd [#allocation4], 0
      %s1755 = sshll.u32 [#allocation11], 4
      %s1756 = int_to_ptr.vmem [resolvable:$true] %s1755
      %s1757 = sshll.u32 %s10, 4
      %s1758 = int_to_ptr.hbm [resolvable:$true] %s1757
      %1760 = dma.vmem_to_hbm [thread:$0]  %s1756, 128, %s1758, [#allocation4]
    $region65: #{tpu_custom_call.1} parent=1 // pred_fallthru
      _
    // Predicated region
    $region66: #{tpu_custom_call.1} parent=1 // pred_check
      _
    $region67: #{tpu_custom_call.1} parent=1 // pred_check_branch
      %1762 = sbr.rel (0) target = $region69
    $region68: #{tpu_custom_call.1} parent=1 // pred_region
      %1764 = dma.done [#allocation4], 128
    $region69: #{tpu_custom_call.1} parent=1 // pred_fallthru
      _
    %1765 = vsyncpa [#allocation3], 1
    %1766 = vsyncpa [#allocation6], 1
    %1767 = vsyncpa [#allocation9], 1
    %1768 = vsyncpa [#allocation4], 1

</llo_original>
